<compile_context>
chip_gen: v7x
topology: tpu7x:2x2x1
jax: 0.10.0
libtpu: 0.0.40
codegen_flags: <defaults>
</compile_context>

<pallas_src>
import jax
import jax.numpy as jnp
from jax.experimental import pallas as pl
from jax.experimental.pallas import tpu as pltpu

NEG_SLOPE = 0.01  # F.leaky_relu default negative_slope


def _leaky(v):
    return jnp.where(v >= 0, v, NEG_SLOPE * v)


# ---------------------------------------------------------------------------
# Fused kernel: one batch element per grid step.  All blocks are lane-dense.
#   x_ref    (1, H,  W*Cin)        packed low-res input
#   y_ref    (1, 2H, 2W*Ch)        packed skip connection
#   wt_ref   (W*Cin, 2*(2W*Ch))    block-diag ConvT weight [even rows | odd rows]
#   mcat_ref (2W*Ch, 3*(2W*Ch))    block-banded fused depthwise*pointwise [dy=0|1|2]
#   bt_ref   (1, 2W*Ch)            ConvT bias, tiled per pixel
#   bp_ref   (1, 2W*Ch)            pointwise bias, tiled per pixel
#   o_ref    (1, 2H, 2W*Ch)        packed output
# ---------------------------------------------------------------------------
def convup_kernel(x_ref, y_ref, wt_ref, mcat_ref, bt_ref, bp_ref, o_ref):
    H2 = o_ref.shape[1]
    W2C = o_ref.shape[2]

    # --- ConvTranspose2d(k=2, s=2): ONE lane-dense MXU matmul ---------------
    r = jnp.dot(x_ref[0], wt_ref[...],
                preferred_element_type=jnp.float32)        # (H, 2*W2C)
    even = r[:, :W2C]                                      # output rows 2i
    odd = r[:, W2C:]                                       # output rows 2i+1
    # Sublane interleave of the two row parities; lane dim (W2C) untouched.
    up = jnp.stack([even, odd], axis=1).reshape(H2, W2C)   # (2H, W2C)

    # --- bias + leaky_relu + skip add: one dense VPU pass --------------------
    a = _leaky(up + bt_ref[...]) + y_ref[0]                # (2H, W2C)

    # --- depthwise 3x3 + pointwise 1x1 fused: banded matmul + row shifts -----
    # P[:, dy-th chunk] = a @ M_dy  where M_dy folds the 3 horizontal taps and
    # the channel mixing (depthwise*pointwise) for vertical offset dy-1.
    P = jnp.dot(a, mcat_ref[...],
                preferred_element_type=jnp.float32)        # (2H, 3*W2C)
    # out[h] = a[h-1]@M0 + a[h]@M1 + a[h+1]@M2  -> apply +/-1 row shifts with
    # exact 0/1 shift matrices on the MXU (no roll, no halo scratch).
    row = jax.lax.broadcasted_iota(jnp.int32, (H2, H2), 0)
    col = jax.lax.broadcasted_iota(jnp.int32, (H2, H2), 1)
    sdn = (col == row - 1).astype(jnp.float32)             # picks P0[h-1]
    sup = (col == row + 1).astype(jnp.float32)             # picks P2[h+1]
    p = (P[:, W2C:2 * W2C]
         + jnp.dot(sdn, P[:, :W2C], preferred_element_type=jnp.float32)
         + jnp.dot(sup, P[:, 2 * W2C:], preferred_element_type=jnp.float32))

    # --- pointwise bias + leaky_relu + single lane-dense store --------------
    o_ref[0] = _leaky(p + bp_ref[...]).astype(o_ref.dtype)


# ---------------------------------------------------------------------------
# Weight packing (XLA side, once per call; in production precompute once).
#   wt_t : (Cin, Ch, 2, 2)  ConvTranspose2d.weight     bt : (Ch,)
#   wd_t : (Ch, 1, 3, 3)    depthwise Conv2d.weight (bias=False)
#   wp_t : (Ch, Ch, 1, 1)   pointwise Conv2d.weight    bp : (Ch,)
# ---------------------------------------------------------------------------
def _pack_weights(wt_t, bt, wd_t, wp_t, bp, W):
    Cin = wt_t.shape[0]
    Ch = wt_t.shape[1]
    W2 = 2 * W

    # ConvT: per row-parity ky, block-diagonal over input pixels j of the
    # (Cin, 2*Ch) block B_ky[ci, kx*Ch+co] = wt_t[ci, co, ky, kx].
    blocks = []
    for ky in range(2):
        b = jnp.transpose(wt_t[:, :, ky, :], (0, 2, 1)).reshape(Cin, 2 * Ch)
        blocks.append(jnp.kron(jnp.eye(W, dtype=jnp.float32), b))
    wt_big = jnp.concatenate(blocks, axis=1)               # (W*Cin, 2*W2*Ch)

    # Fused depthwise*pointwise, one banded matrix per vertical offset dy:
    #   M_dy[w'*Ch+ci, w*Ch+co] = wd[ci,dy,dx]*wp[ci,co]  where w' = w+dx-1
    wp = jnp.transpose(wp_t[:, :, 0, 0])                   # (ci, co)
    wd = wd_t[:, 0]                                        # (Ch, 3, 3)
    ms = []
    for dy in range(3):
        m = jnp.zeros((W2 * Ch, W2 * Ch), dtype=jnp.float32)
        for dx in range(3):
            blk = wd[:, dy, dx][:, None] * wp              # (Ch, Ch)
            m = m + jnp.kron(jnp.eye(W2, k=1 - dx, dtype=jnp.float32), blk)
        ms.append(m)
    mcat = jnp.concatenate(ms, axis=1)                     # (W2*Ch, 3*W2*Ch)

    bt_tl = jnp.tile(bt, W2)[None]                         # (1, W2*Ch)
    bp_tl = jnp.tile(bp, W2)[None]                         # (1, W2*Ch)
    return wt_big, mcat, bt_tl, bp_tl


# ---------------------------------------------------------------------------
# Wrapper: NHWC-native (no NCHW round-trips), lane-dense pallas_call I/O.
# ---------------------------------------------------------------------------
def convup_pallas(x_nhwc, y_nhwc, wt_t, bt, wd_t, wp_t, bp):
    N, H, W, Cin = x_nhwc.shape
    Ch = Cin // 2
    H2, W2 = 2 * H, 2 * W
    W2C = W2 * Ch
    WC = W * Cin

    wt_big, mcat, bt_tl, bp_tl = _pack_weights(wt_t, bt, wd_t, wp_t, bp, W)

    # Free contiguous merges of the trailing (W, C) dims -> lane-dense blocks.
    x_p = x_nhwc.reshape(N, H, WC)
    y_p = y_nhwc.reshape(N, H2, W2C)

    out_p = pl.pallas_call(
        convup_kernel,
        out_shape=jax.ShapeDtypeStruct((N, H2, W2C), jnp.float32),
        grid=(N,),
        in_specs=[
            pl.BlockSpec((1, H, WC), lambda n: (n, 0, 0)),
            pl.BlockSpec((1, H2, W2C), lambda n: (n, 0, 0)),
            pl.BlockSpec((WC, 2 * W2C), lambda n: (0, 0)),
            pl.BlockSpec((W2C, 3 * W2C), lambda n: (0, 0)),
            pl.BlockSpec((1, W2C), lambda n: (0, 0)),
            pl.BlockSpec((1, W2C), lambda n: (0, 0)),
        ],
        out_specs=pl.BlockSpec((1, H2, W2C), lambda n: (n, 0, 0)),
        compiler_params=pltpu.CompilerParams(
            dimension_semantics=("parallel",)),
    )(x_p, y_p, wt_big, mcat, bt_tl, bp_tl)

    return out_p.reshape(N, H2, W2, Ch)


@jax.jit
def convup_forward(x_nhwc, y_nhwc, wt_t, bt, wd_t, wp_t, bp):
    return convup_pallas(x_nhwc, y_nhwc, wt_t, bt, wd_t, wp_t, bp)


# Pure-JAX reference (same math as the PyTorch module, NHWC).
def convup_ref(x, y, wt_t, bt, wd_t, wp_t, bp):
    N, H, W, Cin = x.shape
    Ch = Cin // 2
    H2, W2 = 2 * H, 2 * W
    # ConvTranspose2d(k=2, s=2, p=0)
    t = jnp.einsum('nijc,cokl->nikjlo', x, wt_t).reshape(N, H2, W2, Ch)
    a = _leaky(t + bt) + y
    # depthwise 3x3, SAME padding, no bias
    ap = jnp.pad(a, ((0, 0), (1, 1), (1, 1), (0, 0)))
    wd = wd_t[:, 0]                                        # (Ch, 3, 3)
    d = jnp.zeros_like(a)
    for dy in range(3):
        for dx in range(3):
            d = d + ap[:, dy:dy + H2, dx:dx + W2, :] * wd[:, dy, dx]
    # pointwise 1x1 + bias
    p = jnp.einsum('nhwc,oc->nhwo', d, wp_t[:, :, 0, 0]) + bp
    return _leaky(p)


if __name__ == "__main__":
    # ConvUp(in_channels=16) on a 16x16 input; skip tensor at 2x resolution
    # with in_channels//2 channels.  NHWC (channels-last) is the op's native
    # layout; an NCHW model would convert once at its boundary.
    N, Cin, H, W = 2, 16, 16, 16
    Ch = Cin // 2
    H2, W2 = 2 * H, 2 * W

    key = jax.random.PRNGKey(0)
    k = jax.random.split(key, 7)

    x = jax.random.normal(k[0], (N, H, W, Cin), dtype=jnp.float32)
    y = jax.random.normal(k[1], (N, H2, W2, Ch), dtype=jnp.float32)

    # Parameters in PyTorch layouts:
    wt_t = jax.random.normal(k[2], (Cin, Ch, 2, 2), dtype=jnp.float32) * 0.1  # ConvT.weight
    bt = jax.random.normal(k[3], (Ch,), dtype=jnp.float32) * 0.1              # ConvT.bias
    wd_t = jax.random.normal(k[4], (Ch, 1, 3, 3), dtype=jnp.float32) * 0.1    # depthwise.weight
    wp_t = jax.random.normal(k[5], (Ch, Ch, 1, 1), dtype=jnp.float32) * 0.1   # pointwise.weight
    bp = jax.random.normal(k[6], (Ch,), dtype=jnp.float32) * 0.1              # pointwise.bias

    out = convup_forward(x, y, wt_t, bt, wd_t, wp_t, bp)
    jax.block_until_ready(out)

    assert out.shape == (N, H2, W2, Ch), out.shape
    ref = convup_ref(x, y, wt_t, bt, wd_t, wp_t, bp)
    err = float(jnp.max(jnp.abs(out - ref)))
    # 5e-3 tolerance: allows for MXU f32 matmul multi-pass rounding while
    # still catching any structural error (which would be >> 1e-2).
    assert err < 5e-3, f"max abs err {err}"
    print("KERNEL_OK")
</pallas_src>

<mosaic_0001>
module attributes {stable_mosaic.version = 11 : i64} {
  func.func @convup_kernel(%arg0: i32, %arg1: memref<1x16x256xf32, #tpu.memory_space<vmem>>, %arg2: memref<1x32x256xf32, #tpu.memory_space<vmem>>, %arg3: memref<256x512xf32, #tpu.memory_space<vmem>>, %arg4: memref<256x768xf32, #tpu.memory_space<vmem>>, %arg5: memref<1x256xf32, #tpu.memory_space<vmem>>, %arg6: memref<1x256xf32, #tpu.memory_space<vmem>>, %arg7: memref<1x32x256xf32, #tpu.memory_space<vmem>>) attributes {dimension_semantics = [#tpu.dimension_semantics<parallel>], iteration_bounds = array<i64: 2>, scalar_prefetch = 0 : i64, scratch_operands = 0 : i64, tpu.core_type = #tpu.core_type<tc>, window_params = [{transform_indices = @transform_0, window_bounds = array<i64: 1, 16, 256>}, {transform_indices = @transform_1, window_bounds = array<i64: 1, 32, 256>}, {pipeline_mode = #tpu.pipeline_mode<synchronous>, transform_indices = @transform_2, window_bounds = array<i64: 256, 512>}, {pipeline_mode = #tpu.pipeline_mode<synchronous>, transform_indices = @transform_3, window_bounds = array<i64: 256, 768>}, {pipeline_mode = #tpu.pipeline_mode<synchronous>, transform_indices = @transform_4, window_bounds = array<i64: 1, 256>}, {pipeline_mode = #tpu.pipeline_mode<synchronous>, transform_indices = @transform_5, window_bounds = array<i64: 1, 256>}, {transform_indices = @transform_6, window_bounds = array<i64: 1, 32, 256>}]} {
    %c0 = arith.constant 0 : index
    %c0_0 = arith.constant 0 : index
    %c0_1 = arith.constant 0 : index
    %0 = vector.load %arg1[%c0, %c0_0, %c0_1] : memref<1x16x256xf32, #tpu.memory_space<vmem>>, vector<1x16x256xf32>
    %1 = vector.shape_cast %0 : vector<1x16x256xf32> to vector<16x256xf32>
    %c0_2 = arith.constant 0 : index
    %c0_3 = arith.constant 0 : index
    %2 = vector.load %arg3[%c0_2, %c0_3] : memref<256x512xf32, #tpu.memory_space<vmem>>, vector<256x512xf32>
    %cst = arith.constant dense<0.000000e+00> : vector<16x512xf32>
    %3 = tpu.matmul %1, %2, %cst {dimension_numbers = #tpu.dot_dimension_numbers<[1], [0], [0], [1], [0, 0, 1, 1], [], []>} : vector<16x256xf32>, vector<256x512xf32>, vector<16x512xf32> -> vector<16x512xf32>
    %4 = vector.extract_strided_slice %3 {offsets = [0, 0], sizes = [16, 256], strides = [1, 1]} : vector<16x512xf32> to vector<16x256xf32>
    %5 = vector.extract_strided_slice %3 {offsets = [0, 256], sizes = [16, 256], strides = [1, 1]} : vector<16x512xf32> to vector<16x256xf32>
    %6 = vector.shape_cast %4 : vector<16x256xf32> to vector<16x1x256xf32>
    %7 = vector.shape_cast %5 : vector<16x256xf32> to vector<16x1x256xf32>
    %8 = tpu.concatenate %6, %7 in 1 : vector<16x1x256xf32>, vector<16x1x256xf32> -> vector<16x2x256xf32>
    %9 = vector.shape_cast %8 : vector<16x2x256xf32> to vector<32x256xf32>
    %c0_4 = arith.constant 0 : index
    %c0_5 = arith.constant 0 : index
    %10 = vector.load %arg5[%c0_4, %c0_5] : memref<1x256xf32, #tpu.memory_space<vmem>>, vector<1x256xf32>
    %11 = vector.broadcast %10 : vector<1x256xf32> to vector<32x256xf32>
    %12 = arith.addf %9, %11 : vector<32x256xf32>
    %cst_6 = arith.constant 0.000000e+00 : f32
    %13 = vector.broadcast %cst_6 : f32 to vector<32x256xf32>
    %14 = arith.cmpf oge, %12, %13 : vector<32x256xf32>
    %cst_7 = arith.constant 0.00999999977 : f32
    %15 = vector.broadcast %cst_7 : f32 to vector<32x256xf32>
    %16 = arith.mulf %15, %12 : vector<32x256xf32>
    %17 = arith.select %14, %12, %16 : vector<32x256xi1>, vector<32x256xf32>
    %c0_8 = arith.constant 0 : index
    %c0_9 = arith.constant 0 : index
    %c0_10 = arith.constant 0 : index
    %18 = vector.load %arg2[%c0_8, %c0_9, %c0_10] : memref<1x32x256xf32, #tpu.memory_space<vmem>>, vector<1x32x256xf32>
    %19 = vector.shape_cast %18 : vector<1x32x256xf32> to vector<32x256xf32>
    %20 = arith.addf %17, %19 : vector<32x256xf32>
    %c0_11 = arith.constant 0 : index
    %c0_12 = arith.constant 0 : index
    %21 = vector.load %arg4[%c0_11, %c0_12] : memref<256x768xf32, #tpu.memory_space<vmem>>, vector<256x768xf32>
    %cst_13 = arith.constant dense<0.000000e+00> : vector<32x768xf32>
    %22 = tpu.matmul %20, %21, %cst_13 {dimension_numbers = #tpu.dot_dimension_numbers<[1], [0], [0], [1], [0, 0, 1, 1], [], []>} : vector<32x256xf32>, vector<256x768xf32>, vector<32x768xf32> -> vector<32x768xf32>
    %23 = tpu.iota {dimensions = array<i32: 0>} : vector<32x32xi32>
    %24 = tpu.iota {dimensions = array<i32: 1>} : vector<32x32xi32>
    %c1_i32 = arith.constant 1 : i32
    %25 = vector.broadcast %c1_i32 : i32 to vector<32x32xi32>
    %26 = arith.subi %23, %25 : vector<32x32xi32>
    %27 = arith.cmpi eq, %24, %26 : vector<32x32xi32>
    %28 = arith.extui %27 : vector<32x32xi1> to vector<32x32xi32>
    %29 = arith.sitofp %28 : vector<32x32xi32> to vector<32x32xf32>
    %c1_i32_14 = arith.constant 1 : i32
    %30 = vector.broadcast %c1_i32_14 : i32 to vector<32x32xi32>
    %31 = arith.addi %23, %30 : vector<32x32xi32>
    %32 = arith.cmpi eq, %24, %31 : vector<32x32xi32>
    %33 = arith.extui %32 : vector<32x32xi1> to vector<32x32xi32>
    %34 = arith.sitofp %33 : vector<32x32xi32> to vector<32x32xf32>
    %35 = vector.extract_strided_slice %22 {offsets = [0, 256], sizes = [32, 256], strides = [1, 1]} : vector<32x768xf32> to vector<32x256xf32>
    %36 = vector.extract_strided_slice %22 {offsets = [0, 0], sizes = [32, 256], strides = [1, 1]} : vector<32x768xf32> to vector<32x256xf32>
    %cst_15 = arith.constant dense<0.000000e+00> : vector<32x256xf32>
    %37 = tpu.matmul %29, %36, %cst_15 {dimension_numbers = #tpu.dot_dimension_numbers<[1], [0], [0], [1], [0, 0, 1, 1], [], []>} : vector<32x32xf32>, vector<32x256xf32>, vector<32x256xf32> -> vector<32x256xf32>
    %38 = arith.addf %35, %37 : vector<32x256xf32>
    %39 = vector.extract_strided_slice %22 {offsets = [0, 512], sizes = [32, 256], strides = [1, 1]} : vector<32x768xf32> to vector<32x256xf32>
    %cst_16 = arith.constant dense<0.000000e+00> : vector<32x256xf32>
    %40 = tpu.matmul %34, %39, %cst_16 {dimension_numbers = #tpu.dot_dimension_numbers<[1], [0], [0], [1], [0, 0, 1, 1], [], []>} : vector<32x32xf32>, vector<32x256xf32>, vector<32x256xf32> -> vector<32x256xf32>
    %41 = arith.addf %38, %40 : vector<32x256xf32>
    %c0_17 = arith.constant 0 : index
    %c0_18 = arith.constant 0 : index
    %42 = vector.load %arg6[%c0_17, %c0_18] : memref<1x256xf32, #tpu.memory_space<vmem>>, vector<1x256xf32>
    %43 = vector.broadcast %42 : vector<1x256xf32> to vector<32x256xf32>
    %44 = arith.addf %41, %43 : vector<32x256xf32>
    %cst_19 = arith.constant 0.000000e+00 : f32
    %45 = vector.broadcast %cst_19 : f32 to vector<32x256xf32>
    %46 = arith.cmpf oge, %44, %45 : vector<32x256xf32>
    %cst_20 = arith.constant 0.00999999977 : f32
    %47 = vector.broadcast %cst_20 : f32 to vector<32x256xf32>
    %48 = arith.mulf %47, %44 : vector<32x256xf32>
    %49 = arith.select %46, %44, %48 : vector<32x256xi1>, vector<32x256xf32>
    %c0_21 = arith.constant 0 : index
    %c0_22 = arith.constant 0 : index
    %c0_23 = arith.constant 0 : index
    %50 = vector.load %arg7[%c0_21, %c0_22, %c0_23] : memref<1x32x256xf32, #tpu.memory_space<vmem>>, vector<1x32x256xf32>
    %51 = vector.shape_cast %50 : vector<1x32x256xf32> to vector<32x256xf32>
    %52 = vector.shape_cast %49 : vector<32x256xf32> to vector<1x32x256xf32>
    tpu.vector_store %arg7[%c0_21, %c0_22, %c0_23], %52 {strides = array<i32>} : memref<1x32x256xf32, #tpu.memory_space<vmem>>, vector<1x32x256xf32>,
    return
  }
  func.func @transform_0(%arg0: i32) -> (i32, i32, i32) {
    %c0_i32 = arith.constant 0 : i32
    %c0_i32_0 = arith.constant 0 : i32
    %c0_i32_1 = arith.constant 0 : i32
    return %arg0, %c0_i32, %c0_i32_0 : i32, i32, i32
  }
  func.func @transform_1(%arg0: i32) -> (i32, i32, i32) {
    %c0_i32 = arith.constant 0 : i32
    %c0_i32_0 = arith.constant 0 : i32
    %c0_i32_1 = arith.constant 0 : i32
    return %arg0, %c0_i32, %c0_i32_0 : i32, i32, i32
  }
  func.func @transform_2(%arg0: i32) -> (i32, i32) {
    %c0_i32 = arith.constant 0 : i32
    %c0_i32_0 = arith.constant 0 : i32
    %c0_i32_1 = arith.constant 0 : i32
    return %c0_i32, %c0_i32_0 : i32, i32
  }
  func.func @transform_3(%arg0: i32) -> (i32, i32) {
    %c0_i32 = arith.constant 0 : i32
    %c0_i32_0 = arith.constant 0 : i32
    %c0_i32_1 = arith.constant 0 : i32
    return %c0_i32, %c0_i32_0 : i32, i32
  }
  func.func @transform_4(%arg0: i32) -> (i32, i32) {
    %c0_i32 = arith.constant 0 : i32
    %c0_i32_0 = arith.constant 0 : i32
    %c0_i32_1 = arith.constant 0 : i32
    return %c0_i32, %c0_i32_0 : i32, i32
  }
  func.func @transform_5(%arg0: i32) -> (i32, i32) {
    %c0_i32 = arith.constant 0 : i32
    %c0_i32_0 = arith.constant 0 : i32
    %c0_i32_1 = arith.constant 0 : i32
    return %c0_i32, %c0_i32_0 : i32, i32
  }
  func.func @transform_6(%arg0: i32) -> (i32, i32, i32) {
    %c0_i32 = arith.constant 0 : i32
    %c0_i32_0 = arith.constant 0 : i32
    %c0_i32_1 = arith.constant 0 : i32
    return %arg0, %c0_i32, %c0_i32_0 : i32, i32, i32
  }
}

</mosaic_0001>

<llo_original>
// kernel: tile.13
$region0: #{tile.13}
  #allocation0 [shape = 's32[1]{0}', space=sflag, size = 0x4, scoped, tag = 'scoped memory for tile.13']
  %s0 = inlined_call_operand.vmem [shape: f32[8], index: 0, kind: input, shape index: {}]
  %s1 = inlined_call_operand.vmem [shape: f32[32,8], index: 1, kind: output, shape index: {}]
  // Predicated region
  $region2: #{tile.13} parent=0 // pred_check
    _
  $region3: #{tile.13} parent=0 // pred_check_branch
    %3 = sbr.rel (0) target = $region5
  $region4: #{tile.13} parent=0 // pred_region
    _
  $region5: #{tile.13} parent=0 // pred_fallthru
    _
  %v4 = vld [vmem:[%s0] ss:$0 sm:$0xff]
  %5 = vst [vmem:[%s1] sm:$0xff] %v4
  %s6 = scalar_lea.vmem %s1, 8
  %7 = vst [vmem:[%s6] sm:$0xff] %v4
  %s8 = scalar_lea.vmem %s1, 16
  %9 = vst [vmem:[%s8] sm:$0xff] %v4
  %s10 = scalar_lea.vmem %s1, 24
  %11 = vst [vmem:[%s10] sm:$0xff] %v4

// kernel: tile.14
$region0: #{tile.14}
  %s0 = inlined_call_operand.vmem [shape: f32[32,8], index: 0, kind: input, shape index: {}]
  %s1 = inlined_call_operand.vmem [shape: f32[1,256], index: 1, kind: output, shape index: {}]
  $region1: #{tile.14} parent=0
    #allocation0 [shape = 'u8[8192]{0}', space=vmem, size = 0x2000, scoped, tag = 'scoped mem for output reshape']
    %s2 = smov 3
    %v3 = vld [vmem:[%s0] ss:$16 sm:%s2]
    %vm4 = vcmask 64512
    %5 = vst.msk [vmem:[#allocation0] ss:$8 sm:$0x3] %vm4, %v3
    %s6 = scalar_lea.vmem %s0, 15
    %s7 = smov 3
    %v8 = vld [vmem:[%s6] ss:$16 sm:%s7]
    %9 = vrot.lane.b32.xlu0 %v8, 120
    %v10 = vpop.permute.xlu0 %9
    %vm11 = vcmask 1048512
    %12 = vst.msk [vmem:[#allocation0] ss:$8 sm:$0x3] %vm11, %v10
    %s13 = scalar_lea.vmem %s0, 14
    %s14 = smov 3
    %v15 = vld [vmem:[%s13] ss:$16 sm:%s14]
    %16 = vrot.lane.b32.xlu0 %v15, 112
    %v17 = vpop.permute.xlu0 %16
    %vm18 = vcmask 982912
    %19 = vst.msk [vmem:[#allocation0] ss:$8 sm:$0x3] %vm18, %v17
    %s20 = scalar_lea.vmem %s0, 13
    %s21 = smov 3
    %v22 = vld [vmem:[%s20] ss:$16 sm:%s21]
    %23 = vrot.lane.b32.xlu0 %v22, 104
    %v24 = vpop.permute.xlu0 %23
    %vm25 = vcmask 917312
    %26 = vst.msk [vmem:[#allocation0] ss:$8 sm:$0x3] %vm25, %v24
    %s27 = scalar_lea.vmem %s0, 12
    %s28 = smov 3
    %v29 = vld [vmem:[%s27] ss:$16 sm:%s28]
    %30 = vrot.lane.b32.xlu0 %v29, 96
    %v31 = vpop.permute.xlu0 %30
    %vm32 = vcmask 851712
    %33 = vst.msk [vmem:[#allocation0] ss:$8 sm:$0x3] %vm32, %v31
    %s34 = scalar_lea.vmem %s0, 11
    %s35 = smov 3
    %v36 = vld [vmem:[%s34] ss:$16 sm:%s35]
    %37 = vrot.lane.b32.xlu0 %v36, 88
    %v38 = vpop.permute.xlu0 %37
    %vm39 = vcmask 786112
    %40 = vst.msk [vmem:[#allocation0] ss:$8 sm:$0x3] %vm39, %v38
    %s41 = scalar_lea.vmem %s0, 10
    %s42 = smov 3
    %v43 = vld [vmem:[%s41] ss:$16 sm:%s42]
    %44 = vrot.lane.b32.xlu0 %v43, 80
    %v45 = vpop.permute.xlu0 %44
    %vm46 = vcmask 720512
    %47 = vst.msk [vmem:[#allocation0] ss:$8 sm:$0x3] %vm46, %v45
    %s48 = scalar_lea.vmem %s0, 9
    %s49 = smov 3
    %v50 = vld [vmem:[%s48] ss:$16 sm:%s49]
    %51 = vrot.lane.b32.xlu0 %v50, 72
    %v52 = vpop.permute.xlu0 %51
    %vm53 = vcmask 654912
    %54 = vst.msk [vmem:[#allocation0] ss:$8 sm:$0x3] %vm53, %v52
    %s55 = scalar_lea.vmem %s0, 8
    %s56 = smov 3
    %v57 = vld [vmem:[%s55] ss:$16 sm:%s56]
    %58 = vrot.lane.b32.xlu0 %v57, 64
    %v59 = vpop.permute.xlu0 %58
    %vm60 = vcmask 589312
    %61 = vst.msk [vmem:[#allocation0] ss:$8 sm:$0x3] %vm60, %v59
    %s62 = scalar_lea.vmem %s0, 7
    %s63 = smov 3
    %v64 = vld [vmem:[%s62] ss:$16 sm:%s63]
    %65 = vrot.lane.b32.xlu0 %v64, 56
    %v66 = vpop.permute.xlu0 %65
    %vm67 = vcmask 523712
    %68 = vst.msk [vmem:[#allocation0] ss:$8 sm:$0x3] %vm67, %v66
    %s69 = scalar_lea.vmem %s0, 6
    %s70 = smov 3
    %v71 = vld [vmem:[%s69] ss:$16 sm:%s70]
    %72 = vrot.lane.b32.xlu0 %v71, 48
    %v73 = vpop.permute.xlu0 %72
    %vm74 = vcmask 458112
    %75 = vst.msk [vmem:[#allocation0] ss:$8 sm:$0x3] %vm74, %v73
    %s76 = scalar_lea.vmem %s0, 5
    %s77 = smov 3
    %v78 = vld [vmem:[%s76] ss:$16 sm:%s77]
    %79 = vrot.lane.b32.xlu0 %v78, 40
    %v80 = vpop.permute.xlu0 %79
    %vm81 = vcmask 392512
    %82 = vst.msk [vmem:[#allocation0] ss:$8 sm:$0x3] %vm81, %v80
    %s83 = scalar_lea.vmem %s0, 4
    %s84 = smov 3
    %v85 = vld [vmem:[%s83] ss:$16 sm:%s84]
    %86 = vrot.lane.b32.xlu0 %v85, 32
    %v87 = vpop.permute.xlu0 %86
    %vm88 = vcmask 326912
    %89 = vst.msk [vmem:[#allocation0] ss:$8 sm:$0x3] %vm88, %v87
    %s90 = scalar_lea.vmem %s0, 3
    %s91 = smov 3
    %v92 = vld [vmem:[%s90] ss:$16 sm:%s91]
    %93 = vrot.lane.b32.xlu0 %v92, 24
    %v94 = vpop.permute.xlu0 %93
    %vm95 = vcmask 261312
    %96 = vst.msk [vmem:[#allocation0] ss:$8 sm:$0x3] %vm95, %v94
    %s97 = scalar_lea.vmem %s0, 2
    %s98 = smov 3
    %v99 = vld [vmem:[%s97] ss:$16 sm:%s98]
    %100 = vrot.lane.b32.xlu0 %v99, 16
    %v101 = vpop.permute.xlu0 %100
    %vm102 = vcmask 195712
    %103 = vst.msk [vmem:[#allocation0] ss:$8 sm:$0x3] %vm102, %v101
    %s104 = scalar_lea.vmem %s0, 1
    %s105 = smov 3
    %v106 = vld [vmem:[%s104] ss:$16 sm:%s105]
    %107 = vrot.lane.b32.xlu0 %v106, 8
    %v108 = vpop.permute.xlu0 %107
    %vm109 = vcmask 130112
    %110 = vst.msk [vmem:[#allocation0] ss:$8 sm:$0x3] %vm109, %v108
    %s112 = sshllo.u32 0, 1
    %v114 = vld [vmem:[#allocation0] sm:%s112]
    %s115 = sshllo.u32 0, 1
    %116 = vst [vmem:[%s1] sm:%s115] %v114
    %s117 = scalar_lea.vmem [#allocation0], 8
    %v118 = vld [vmem:[%s117] sm:%s112]
    %s119 = sshllo.u32 0, 1
    %s120 = scalar_lea.vmem %s1, 1
    %121 = vst [vmem:[%s120] sm:%s119] %v118

// kernel: convup_forward.1
$region0: #{convup_forward.1}
  #allocation0 [shape = 'u32[]', space=smem, size = 0x4, offset = 0x4, fixed_abs, tag = 'smem constant byte address 0x4 - core index']
  #allocation1 [shape = 'u32[144,128]{1,0:T(1,128)}', space=vmem, size = 0x12000, scoped, tag = 'internal scratch']
  %s0 = inlined_call_operand.vmem [shape: f32[2,16,256], index: 0, kind: input, shape index: {}]
  %s1 = inlined_call_operand.vmem [shape: f32[2,32,256], index: 1, kind: input, shape index: {}]
  %s2 = inlined_call_operand.vmem [shape: f32[256,512], index: 2, kind: input, shape index: {}]
  %s3 = inlined_call_operand.vmem [shape: f32[256,768], index: 3, kind: input, shape index: {}]
  %s4 = inlined_call_operand.vmem [shape: f32[1,256], index: 4, kind: input, shape index: {}]
  %s5 = inlined_call_operand.vmem [shape: f32[1,256], index: 5, kind: input, shape index: {}]
  %s6 = inlined_call_operand.vmem [shape: f32[2,32,256], index: 6, kind: output, shape index: {}]
  %s7 = sld [smem:[#allocation0]]
  $region57: #{convup_forward.1} parent=0
    _
  %s9 = ssub.s32 1, %s7
  %s10 = scalar_select 0, %s9, %s7
  loop: start=0, step=1, limit=4
  $region2: #{convup_forward.1} parent=0 // loop_pre_header
    _
  $region3: #{convup_forward.1} parent=0 // loop_header
    %s12 = sphi 0, %s16
    %p13 = scmp.ge.s32.totalorder %s12, 4
    %s22 = sphi 0, %s24
    %s25 = sphi 0, %s22
    %s26 = sphi 0, %s25
    %s42 = sphi 0, %s26
    %s48 = sphi 0, %s50
    %s51 = sphi 0, %s48
    %s52 = sphi 0, %s51
    %s68 = sphi 0, %s52
    %s72 = sphi 0, %s72
    %s74 = sphi 0, %s72
    %s75 = sphi 0, %s74
    %s89 = sphi 0, %s75
    %s93 = sphi 0, %s93
    %s95 = sphi 0, %s93
    %s96 = sphi 0, %s95
    %s110 = sphi 0, %s96
    %s114 = sphi 0, %s114
    %s116 = sphi 0, %s114
    %s117 = sphi 0, %s116
    %s131 = sphi 0, %s117
    %s135 = sphi 0, %s135
    %s137 = sphi 0, %s135
    %s138 = sphi 0, %s137
    %s152 = sphi 0, %s138
    %s158 = sphi 0, %s160
    %s161 = sphi 0, %s158
    %s162 = sphi 0, %s161
    %s178 = sphi 0, %s162
  $region4: #{convup_forward.1} parent=0 // loop_header_branch
    %15 = sbr.rel (%p13) target = $region8
  $region5: #{convup_forward.1} parent=0 // loop_body
    %s17 = ssub.s32 %s12, 1
    %s18 = ssub.s32 %s12, 2
    %s19 = sadd.s32 %s12, 1
    %s20 = ssub.s32 %s12, %s19
    %p21 = scmp.eq.s32.totalorder %s20, 0
    %s23 = sadd.s32 %s22, 1
    %s24 = scalar_select %p21, %s22, %s23
    %p27 = pneg %p21
    %p28 = scmp.eq.s32.totalorder %s12, 1
    %p29 = por %p27, %p28
    %p30 = scmp.ne.s32.totalorder %s22, %s25
    %p31 = scmp.eq.s32.totalorder %s12, 0
    %p32 = por %p30, %p31
    %p33 = scmp.ne.s32.totalorder %s22, %s25
    %p34 = scmp.eq.s32.totalorder %s17, 1
    %p35 = por %p33, %p34
    %p36 = scmp.ne.s32.totalorder %s25, %s26
    %p37 = scmp.eq.s32.totalorder %s17, 0
    %p38 = por %p36, %p37
    %p39 = scmp.ne.s32.totalorder %s25, %s26
    %p40 = scmp.eq.s32.totalorder %s18, 1
    %p41 = por %p39, %p40
    %p43 = scmp.ne.s32.totalorder %s26, %s42
    %p44 = scmp.eq.s32.totalorder %s18, 0
    %p45 = por %p43, %p44
    %s46 = ssub.s32 %s12, %s19
    %p47 = scmp.eq.s32.totalorder %s46, 0
    %s49 = sadd.s32 %s48, 1
    %s50 = scalar_select %p47, %s48, %s49
    %p53 = pneg %p47
    %p54 = scmp.eq.s32.totalorder %s12, 1
    %p55 = por %p53, %p54
    %p56 = scmp.ne.s32.totalorder %s48, %s51
    %p57 = scmp.eq.s32.totalorder %s12, 0
    %p58 = por %p56, %p57
    %p59 = scmp.ne.s32.totalorder %s48, %s51
    %p60 = scmp.eq.s32.totalorder %s17, 1
    %p61 = por %p59, %p60
    %p62 = scmp.ne.s32.totalorder %s51, %s52
    %p63 = scmp.eq.s32.totalorder %s17, 0
    %p64 = por %p62, %p63
    %p65 = scmp.ne.s32.totalorder %s51, %s52
    %p66 = scmp.eq.s32.totalorder %s18, 1
    %p67 = por %p65, %p66
    %p69 = scmp.ne.s32.totalorder %s52, %s68
    %p70 = scmp.eq.s32.totalorder %s18, 0
    %p71 = por %p69, %p70
    %s73 = sadd.s32 %s72, 1
    %p76 = scmp.eq.s32.totalorder %s12, 1
    %p77 = scmp.ne.s32.totalorder %s72, %s74
    %p78 = scmp.eq.s32.totalorder %s12, 0
    %p79 = por %p77, %p78
    %p80 = scmp.ne.s32.totalorder %s72, %s74
    %p81 = scmp.eq.s32.totalorder %s17, 1
    %p82 = por %p80, %p81
    %p83 = scmp.ne.s32.totalorder %s74, %s75
    %p84 = scmp.eq.s32.totalorder %s17, 0
    %p85 = por %p83, %p84
    %p86 = scmp.ne.s32.totalorder %s74, %s75
    %p87 = scmp.eq.s32.totalorder %s18, 1
    %p88 = por %p86, %p87
    %p90 = scmp.ne.s32.totalorder %s75, %s89
    %p91 = scmp.eq.s32.totalorder %s18, 0
    %p92 = por %p90, %p91
    %s94 = sadd.s32 %s93, 1
    %p97 = scmp.eq.s32.totalorder %s12, 1
    %p98 = scmp.ne.s32.totalorder %s93, %s95
    %p99 = scmp.eq.s32.totalorder %s12, 0
    %p100 = por %p98, %p99
    %p101 = scmp.ne.s32.totalorder %s93, %s95
    %p102 = scmp.eq.s32.totalorder %s17, 1
    %p103 = por %p101, %p102
    %p104 = scmp.ne.s32.totalorder %s95, %s96
    %p105 = scmp.eq.s32.totalorder %s17, 0
    %p106 = por %p104, %p105
    %p107 = scmp.ne.s32.totalorder %s95, %s96
    %p108 = scmp.eq.s32.totalorder %s18, 1
    %p109 = por %p107, %p108
    %p111 = scmp.ne.s32.totalorder %s96, %s110
    %p112 = scmp.eq.s32.totalorder %s18, 0
    %p113 = por %p111, %p112
    %s115 = sadd.s32 %s114, 1
    %p118 = scmp.eq.s32.totalorder %s12, 1
    %p119 = scmp.ne.s32.totalorder %s114, %s116
    %p120 = scmp.eq.s32.totalorder %s12, 0
    %p121 = por %p119, %p120
    %p122 = scmp.ne.s32.totalorder %s114, %s116
    %p123 = scmp.eq.s32.totalorder %s17, 1
    %p124 = por %p122, %p123
    %p125 = scmp.ne.s32.totalorder %s116, %s117
    %p126 = scmp.eq.s32.totalorder %s17, 0
    %p127 = por %p125, %p126
    %p128 = scmp.ne.s32.totalorder %s116, %s117
    %p129 = scmp.eq.s32.totalorder %s18, 1
    %p130 = por %p128, %p129
    %p132 = scmp.ne.s32.totalorder %s117, %s131
    %p133 = scmp.eq.s32.totalorder %s18, 0
    %p134 = por %p132, %p133
    %s136 = sadd.s32 %s135, 1
    %p139 = scmp.eq.s32.totalorder %s12, 1
    %p140 = scmp.ne.s32.totalorder %s135, %s137
    %p141 = scmp.eq.s32.totalorder %s12, 0
    %p142 = por %p140, %p141
    %p143 = scmp.ne.s32.totalorder %s135, %s137
    %p144 = scmp.eq.s32.totalorder %s17, 1
    %p145 = por %p143, %p144
    %p146 = scmp.ne.s32.totalorder %s137, %s138
    %p147 = scmp.eq.s32.totalorder %s17, 0
    %p148 = por %p146, %p147
    %p149 = scmp.ne.s32.totalorder %s137, %s138
    %p150 = scmp.eq.s32.totalorder %s18, 1
    %p151 = por %p149, %p150
    %p153 = scmp.ne.s32.totalorder %s138, %s152
    %p154 = scmp.eq.s32.totalorder %s18, 0
    %p155 = por %p153, %p154
    %s156 = ssub.s32 %s12, %s19
    %p157 = scmp.eq.s32.totalorder %s156, 0
    %s159 = sadd.s32 %s158, 1
    %s160 = scalar_select %p157, %s158, %s159
    %p163 = pneg %p157
    %p164 = scmp.eq.s32.totalorder %s12, 1
    %p165 = por %p163, %p164
    %p166 = scmp.ne.s32.totalorder %s158, %s161
    %p167 = scmp.eq.s32.totalorder %s12, 0
    %p168 = por %p166, %p167
    %p169 = scmp.ne.s32.totalorder %s158, %s161
    %p170 = scmp.eq.s32.totalorder %s17, 1
    %p171 = por %p169, %p170
    %p172 = scmp.ne.s32.totalorder %s161, %s162
    %p173 = scmp.eq.s32.totalorder %s17, 0
    %p174 = por %p172, %p173
    %p175 = scmp.ne.s32.totalorder %s161, %s162
    %p176 = scmp.eq.s32.totalorder %s18, 1
    %p177 = por %p175, %p176
    %p179 = scmp.ne.s32.totalorder %s162, %s178
    %p180 = scmp.eq.s32.totalorder %s18, 0
    %p181 = por %p179, %p180
    %p182 = scmp.le.s32.totalorder 1, %s12
    %p183 = scmp.lt.s32.totalorder %s12, 3
    %p184 = pnand %p182, %p183
    %p185 = pneg %p184
    // Predicated region
    $region9: #{convup_forward.1} parent=5 // pred_check
      _
    $region10: #{convup_forward.1} parent=5 // pred_check_branch
      %187 = sbr.rel (%p184) target = $region12
    $region11: #{convup_forward.1} parent=5 // pred_region
      %s188 = ssub.s32 %s12, 1
      // Predicated region
      $region13: #{convup_forward.1} parent=11 // pred_check
        %p189 = pneg %p85
      $region14: #{convup_forward.1} parent=11 // pred_check_branch
        %191 = sbr.rel (%p189) target = $region16
      $region15: #{convup_forward.1} parent=11 // pred_region
        _
      $region16: #{convup_forward.1} parent=11 // pred_fallthru
        _
      // Predicated region
      $region17: #{convup_forward.1} parent=11 // pred_check
        %p192 = pneg %p106
      $region18: #{convup_forward.1} parent=11 // pred_check_branch
        %194 = sbr.rel (%p192) target = $region20
      $region19: #{convup_forward.1} parent=11 // pred_region
        _
      $region20: #{convup_forward.1} parent=11 // pred_fallthru
        _
      // Predicated region
      $region21: #{convup_forward.1} parent=11 // pred_check
        %p195 = pneg %p127
      $region22: #{convup_forward.1} parent=11 // pred_check_branch
        %197 = sbr.rel (%p195) target = $region24
      $region23: #{convup_forward.1} parent=11 // pred_region
        _
      $region24: #{convup_forward.1} parent=11 // pred_fallthru
        _
      // Predicated region
      $region25: #{convup_forward.1} parent=11 // pred_check
        %p198 = pneg %p148
      $region26: #{convup_forward.1} parent=11 // pred_check_branch
        %200 = sbr.rel (%p198) target = $region28
      $region27: #{convup_forward.1} parent=11 // pred_region
        _
      $region28: #{convup_forward.1} parent=11 // pred_fallthru
        _
    $region12: #{convup_forward.1} parent=5 // pred_fallthru
      _
    %p201 = scmp.lt.s32.totalorder %s12, 2
    // Predicated region
    $region29: #{convup_forward.1} parent=5 // pred_check
      %p202 = pneg %p201
    $region30: #{convup_forward.1} parent=5 // pred_check_branch
      %204 = sbr.rel (%p202) target = $region32
    $region31: #{convup_forward.1} parent=5 // pred_region
      // Predicated region
      $region33: #{convup_forward.1} parent=31 // pred_check
        %p205 = pneg %p32
      $region34: #{convup_forward.1} parent=31 // pred_check_branch
        %207 = sbr.rel (%p205) target = $region36
      $region35: #{convup_forward.1} parent=31 // pred_region
        %p208 = scmp.lt.s32.totalorder %s12, 1
        %s209 = scalar_select %p208, %s12, 1
        %s210 = smul.addr %s209, 4
        %s211 = smul.addr %s210, 8
        %s212 = scalar_lea.vmem %s0, %s211
      $region36: #{convup_forward.1} parent=31 // pred_fallthru
        _
      // Predicated region
      $region37: #{convup_forward.1} parent=31 // pred_check
        %p213 = pneg %p58
      $region38: #{convup_forward.1} parent=31 // pred_check_branch
        %215 = sbr.rel (%p213) target = $region40
      $region39: #{convup_forward.1} parent=31 // pred_region
        %p216 = scmp.lt.s32.totalorder %s12, 1
        %s217 = scalar_select %p216, %s12, 1
        %s218 = smul.addr %s217, 8
        %s219 = smul.addr %s218, 8
        %s220 = scalar_lea.vmem %s1, %s219
      $region40: #{convup_forward.1} parent=31 // pred_fallthru
        _
    $region32: #{convup_forward.1} parent=5 // pred_fallthru
      _
    %p221 = scmp.le.s32.totalorder 1, %s12
    %p222 = scmp.lt.s32.totalorder %s12, 3
    %p223 = pnand %p221, %p222
    %p224 = pneg %p223
    // Predicated region
    $region41: #{convup_forward.1} parent=5 // pred_check
      _
    $region42: #{convup_forward.1} parent=5 // pred_check_branch
      %226 = sbr.rel (%p223) target = $region44
    $region43: #{convup_forward.1} parent=5 // pred_region
      %s227 = ssub.s32 %s12, 1
      %p228 = scmp.lt.s32.totalorder %s17, 1
      %s229 = scalar_select %p228, %s17, 1
      %s230 = smul.addr %s229, 4
      %s231 = smul.addr %s230, 8
      %s232 = scalar_lea.vmem %s0, %s231
      %p233 = pneg %p38
      %p234 = pneg %p35
      %p235 = scmp.lt.s32.totalorder %s17, 1
      %s236 = scalar_select %p235, %s17, 1
      %s237 = smul.addr %s236, 8
      %s238 = smul.addr %s237, 8
      %s239 = scalar_lea.vmem %s1, %s238
      %p240 = pneg %p64
      %p241 = pneg %p61
      %p242 = pneg %p85
      %p243 = pneg %p82
      %p244 = pneg %p106
      %p245 = pneg %p103
      %p246 = pneg %p127
      %p247 = pneg %p124
      %p248 = pneg %p148
      %p249 = pneg %p145
      %p250 = pneg %p174
      %p251 = pneg %p171
      %p252 = scmp.lt.s32.totalorder %s17, 1
      %s253 = scalar_select %p252, %s17, 1
      %s254 = smul.addr %s253, 8
      %s255 = smul.addr %s254, 8
      %s256 = scalar_lea.vmem %s6, %s255
      %p257 = scmp.lt.s32.totalorder %s17, 1
      %s258 = scalar_select %p257, %s17, 1
      %s259 = smul.addr %s258, 4
      %s260 = smul.addr %s259, 8
      %s261 = scalar_lea.vmem %s0, %s260
      %p262 = scmp.lt.s32.totalorder %s17, 1
      %s263 = scalar_select %p262, %s17, 1
      %s264 = smul.addr %s263, 8
      %s265 = smul.addr %s264, 8
      %s266 = scalar_lea.vmem %s1, %s265
      %p267 = scmp.lt.s32.totalorder %s17, 1
      %s268 = scalar_select %p267, %s17, 1
      %s269 = smul.addr %s268, 8
      %s270 = smul.addr %s269, 8
      %s271 = scalar_lea.vmem %s6, %s270
      %v272 = vld [vmem:[%s261] sm:$0xff]
      %v273 = vld [vmem:[%s261 + $0x8] sm:$0xff]
      %v274 = vld [vmem:[%s261 + $0x10] sm:$0xff]
      %v275 = vld [vmem:[%s261 + $0x18] sm:$0xff]
      %v276 = vld [vmem:[%s2] sm:$0xff]
      %v277 = vld [vmem:[%s2 + $0x8] sm:$0xff]
      %v278 = vld [vmem:[%s2 + $0x10] sm:$0xff]
      %v279 = vld [vmem:[%s2 + $0x18] sm:$0xff]
      %v280 = vld [vmem:[%s2 + $0x20] sm:$0xff]
      %v281 = vld [vmem:[%s2 + $0x28] sm:$0xff]
      %v282 = vld [vmem:[%s2 + $0x30] sm:$0xff]
      %v283 = vld [vmem:[%s2 + $0x38] sm:$0xff]
      %v284 = vld [vmem:[%s2 + $0x40] sm:$0xff]
      %v285 = vld [vmem:[%s2 + $0x48] sm:$0xff]
      %v286 = vld [vmem:[%s2 + $0x50] sm:$0xff]
      %v287 = vld [vmem:[%s2 + $0x58] sm:$0xff]
      %v288 = vld [vmem:[%s2 + $0x60] sm:$0xff]
      %v289 = vld [vmem:[%s2 + $0x68] sm:$0xff]
      %v290 = vld [vmem:[%s2 + $0x70] sm:$0xff]
      %v291 = vld [vmem:[%s2 + $0x78] sm:$0xff]
      %v292 = vld [vmem:[%s2 + $0x80] sm:$0xff]
      %v293 = vld [vmem:[%s2 + $0x88] sm:$0xff]
      %v294 = vld [vmem:[%s2 + $0x90] sm:$0xff]
      %v295 = vld [vmem:[%s2 + $0x98] sm:$0xff]
      %v296 = vld [vmem:[%s2 + $0xa0] sm:$0xff]
      %v297 = vld [vmem:[%s2 + $0xa8] sm:$0xff]
      %v298 = vld [vmem:[%s2 + $0xb0] sm:$0xff]
      %v299 = vld [vmem:[%s2 + $0xb8] sm:$0xff]
      %v300 = vld [vmem:[%s2 + $0xc0] sm:$0xff]
      %v301 = vld [vmem:[%s2 + $0xc8] sm:$0xff]
      %v302 = vld [vmem:[%s2 + $0xd0] sm:$0xff]
      %v303 = vld [vmem:[%s2 + $0xd8] sm:$0xff]
      %v304 = vld [vmem:[%s2 + $0xe0] sm:$0xff]
      %v305 = vld [vmem:[%s2 + $0xe8] sm:$0xff]
      %v306 = vld [vmem:[%s2 + $0xf0] sm:$0xff]
      %v307 = vld [vmem:[%s2 + $0xf8] sm:$0xff]
      %v308 = vld [vmem:[%s2 + $0x100] sm:$0xff]
      %v309 = vld [vmem:[%s2 + $0x108] sm:$0xff]
      %v310 = vld [vmem:[%s2 + $0x110] sm:$0xff]
      %v311 = vld [vmem:[%s2 + $0x118] sm:$0xff]
      %v312 = vld [vmem:[%s2 + $0x120] sm:$0xff]
      %v313 = vld [vmem:[%s2 + $0x128] sm:$0xff]
      %v314 = vld [vmem:[%s2 + $0x130] sm:$0xff]
      %v315 = vld [vmem:[%s2 + $0x138] sm:$0xff]
      %v316 = vld [vmem:[%s2 + $0x140] sm:$0xff]
      %v317 = vld [vmem:[%s2 + $0x148] sm:$0xff]
      %v318 = vld [vmem:[%s2 + $0x150] sm:$0xff]
      %v319 = vld [vmem:[%s2 + $0x158] sm:$0xff]
      %v320 = vld [vmem:[%s2 + $0x160] sm:$0xff]
      %v321 = vld [vmem:[%s2 + $0x168] sm:$0xff]
      %v322 = vld [vmem:[%s2 + $0x170] sm:$0xff]
      %v323 = vld [vmem:[%s2 + $0x178] sm:$0xff]
      %v324 = vld [vmem:[%s2 + $0x180] sm:$0xff]
      %v325 = vld [vmem:[%s2 + $0x188] sm:$0xff]
      %v326 = vld [vmem:[%s2 + $0x190] sm:$0xff]
      %v327 = vld [vmem:[%s2 + $0x198] sm:$0xff]
      %v328 = vld [vmem:[%s2 + $0x1a0] sm:$0xff]
      %v329 = vld [vmem:[%s2 + $0x1a8] sm:$0xff]
      %v330 = vld [vmem:[%s2 + $0x1b0] sm:$0xff]
      %v331 = vld [vmem:[%s2 + $0x1b8] sm:$0xff]
      %v332 = vld [vmem:[%s2 + $0x1c0] sm:$0xff]
      %v333 = vld [vmem:[%s2 + $0x1c8] sm:$0xff]
      %v334 = vld [vmem:[%s2 + $0x1d0] sm:$0xff]
      %v335 = vld [vmem:[%s2 + $0x1d8] sm:$0xff]
      %v336 = vld [vmem:[%s2 + $0x1e0] sm:$0xff]
      %v337 = vld [vmem:[%s2 + $0x1e8] sm:$0xff]
      %v338 = vld [vmem:[%s2 + $0x1f0] sm:$0xff]
      %v339 = vld [vmem:[%s2 + $0x1f8] sm:$0xff]
      %v340 = vld [vmem:[%s2 + $0x200] sm:$0xff]
      %v341 = vld [vmem:[%s2 + $0x208] sm:$0xff]
      %v342 = vld [vmem:[%s2 + $0x210] sm:$0xff]
      %v343 = vld [vmem:[%s2 + $0x218] sm:$0xff]
      %v344 = vld [vmem:[%s2 + $0x220] sm:$0xff]
      %v345 = vld [vmem:[%s2 + $0x228] sm:$0xff]
      %v346 = vld [vmem:[%s2 + $0x230] sm:$0xff]
      %v347 = vld [vmem:[%s2 + $0x238] sm:$0xff]
      %v348 = vld [vmem:[%s2 + $0x240] sm:$0xff]
      %v349 = vld [vmem:[%s2 + $0x248] sm:$0xff]
      %v350 = vld [vmem:[%s2 + $0x250] sm:$0xff]
      %v351 = vld [vmem:[%s2 + $0x258] sm:$0xff]
      %v352 = vld [vmem:[%s2 + $0x260] sm:$0xff]
      %v353 = vld [vmem:[%s2 + $0x268] sm:$0xff]
      %v354 = vld [vmem:[%s2 + $0x270] sm:$0xff]
      %v355 = vld [vmem:[%s2 + $0x278] sm:$0xff]
      %v356 = vld [vmem:[%s2 + $0x280] sm:$0xff]
      %v357 = vld [vmem:[%s2 + $0x288] sm:$0xff]
      %v358 = vld [vmem:[%s2 + $0x290] sm:$0xff]
      %v359 = vld [vmem:[%s2 + $0x298] sm:$0xff]
      %v360 = vld [vmem:[%s2 + $0x2a0] sm:$0xff]
      %v361 = vld [vmem:[%s2 + $0x2a8] sm:$0xff]
      %v362 = vld [vmem:[%s2 + $0x2b0] sm:$0xff]
      %v363 = vld [vmem:[%s2 + $0x2b8] sm:$0xff]
      %v364 = vld [vmem:[%s2 + $0x2c0] sm:$0xff]
      %v365 = vld [vmem:[%s2 + $0x2c8] sm:$0xff]
      %v366 = vld [vmem:[%s2 + $0x2d0] sm:$0xff]
      %v367 = vld [vmem:[%s2 + $0x2d8] sm:$0xff]
      %v368 = vld [vmem:[%s2 + $0x2e0] sm:$0xff]
      %v369 = vld [vmem:[%s2 + $0x2e8] sm:$0xff]
      %v370 = vld [vmem:[%s2 + $0x2f0] sm:$0xff]
      %v371 = vld [vmem:[%s2 + $0x2f8] sm:$0xff]
      %v372 = vld [vmem:[%s2 + $0x300] sm:$0xff]
      %v373 = vld [vmem:[%s2 + $0x308] sm:$0xff]
      %v374 = vld [vmem:[%s2 + $0x310] sm:$0xff]
      %v375 = vld [vmem:[%s2 + $0x318] sm:$0xff]
      %v376 = vld [vmem:[%s2 + $0x320] sm:$0xff]
      %v377 = vld [vmem:[%s2 + $0x328] sm:$0xff]
      %v378 = vld [vmem:[%s2 + $0x330] sm:$0xff]
      %v379 = vld [vmem:[%s2 + $0x338] sm:$0xff]
      %v380 = vld [vmem:[%s2 + $0x340] sm:$0xff]
      %v381 = vld [vmem:[%s2 + $0x348] sm:$0xff]
      %v382 = vld [vmem:[%s2 + $0x350] sm:$0xff]
      %v383 = vld [vmem:[%s2 + $0x358] sm:$0xff]
      %v384 = vld [vmem:[%s2 + $0x360] sm:$0xff]
      %v385 = vld [vmem:[%s2 + $0x368] sm:$0xff]
      %v386 = vld [vmem:[%s2 + $0x370] sm:$0xff]
      %v387 = vld [vmem:[%s2 + $0x378] sm:$0xff]
      %v388 = vld [vmem:[%s2 + $0x380] sm:$0xff]
      %v389 = vld [vmem:[%s2 + $0x388] sm:$0xff]
      %v390 = vld [vmem:[%s2 + $0x390] sm:$0xff]
      %v391 = vld [vmem:[%s2 + $0x398] sm:$0xff]
      %v392 = vld [vmem:[%s2 + $0x3a0] sm:$0xff]
      %v393 = vld [vmem:[%s2 + $0x3a8] sm:$0xff]
      %v394 = vld [vmem:[%s2 + $0x3b0] sm:$0xff]
      %v395 = vld [vmem:[%s2 + $0x3b8] sm:$0xff]
      %v396 = vld [vmem:[%s2 + $0x3c0] sm:$0xff]
      %v397 = vld [vmem:[%s2 + $0x3c8] sm:$0xff]
      %v398 = vld [vmem:[%s2 + $0x3d0] sm:$0xff]
      %v399 = vld [vmem:[%s2 + $0x3d8] sm:$0xff]
      %v400 = vld [vmem:[%s2 + $0x3e0] sm:$0xff]
      %v401 = vld [vmem:[%s2 + $0x3e8] sm:$0xff]
      %v402 = vld [vmem:[%s2 + $0x3f0] sm:$0xff]
      %v403 = vld [vmem:[%s2 + $0x3f8] sm:$0xff]
      %404 = vmatprep.subr.mxu0 %v277
      %405 = vmatpush1.msra.mxu0 %v276
      %406 = vmatprep.subr.mxu0 %v281
      %407 = vmatpush1.msra.mxu0 %v280
      %408 = vmatprep.subr.mxu0 %v285
      %409 = vmatpush1.msra.mxu0 %v284
      %410 = vmatprep.subr.mxu0 %v289
      %411 = vmatpush1.msra.mxu0 %v288
      %412 = vmatprep.subr.mxu0 %v293
      %413 = vmatpush1.msra.mxu0 %v292
      %414 = vmatprep.subr.mxu0 %v297
      %415 = vmatpush1.msra.mxu0 %v296
      %416 = vmatprep.subr.mxu0 %v301
      %417 = vmatpush1.msra.mxu0 %v300
      %418 = vmatprep.subr.mxu0 %v305
      %419 = vmatpush1.msra.mxu0 %v304
      %420 = vmatprep.subr.mxu0 %v309
      %421 = vmatpush1.msra.mxu0 %v308
      %422 = vmatprep.subr.mxu0 %v313
      %423 = vmatpush1.msra.mxu0 %v312
      %424 = vmatprep.subr.mxu0 %v317
      %425 = vmatpush1.msra.mxu0 %v316
      %426 = vmatprep.subr.mxu0 %v321
      %427 = vmatpush1.msra.mxu0 %v320
      %428 = vmatprep.subr.mxu0 %v325
      %429 = vmatpush1.msra.mxu0 %v324
      %430 = vmatprep.subr.mxu0 %v329
      %431 = vmatpush1.msra.mxu0 %v328
      %432 = vmatprep.subr.mxu0 %v333
      %433 = vmatpush1.msra.mxu0 %v332
      %434 = vmatprep.subr.mxu0 %v337
      %435 = vmatpush1.msra.mxu0 %v336
      %436 = vmatprep.subr.mxu0 %v341
      %437 = vmatpush1.msra.mxu0 %v340
      %438 = vmatprep.subr.mxu0 %v345
      %439 = vmatpush1.msra.mxu0 %v344
      %440 = vmatprep.subr.mxu0 %v349
      %441 = vmatpush1.msra.mxu0 %v348
      %442 = vmatprep.subr.mxu0 %v353
      %443 = vmatpush1.msra.mxu0 %v352
      %444 = vmatprep.subr.mxu0 %v357
      %445 = vmatpush1.msra.mxu0 %v356
      %446 = vmatprep.subr.mxu0 %v361
      %447 = vmatpush1.msra.mxu0 %v360
      %448 = vmatprep.subr.mxu0 %v365
      %449 = vmatpush1.msra.mxu0 %v364
      %450 = vmatprep.subr.mxu0 %v369
      %451 = vmatpush1.msra.mxu0 %v368
      %452 = vmatprep.subr.mxu0 %v373
      %453 = vmatpush1.msra.mxu0 %v372
      %454 = vmatprep.subr.mxu0 %v377
      %455 = vmatpush1.msra.mxu0 %v376
      %456 = vmatprep.subr.mxu0 %v381
      %457 = vmatpush1.msra.mxu0 %v380
      %458 = vmatprep.subr.mxu0 %v385
      %459 = vmatpush1.msra.mxu0 %v384
      %460 = vmatprep.subr.mxu0 %v389
      %461 = vmatpush1.msra.mxu0 %v388
      %462 = vmatprep.subr.mxu0 %v393
      %463 = vmatpush1.msra.mxu0 %v392
      %464 = vmatprep.subr.mxu0 %v397
      %465 = vmatpush1.msra.mxu0 %v396
      %466 = vmatprep.subr.mxu0 %v401
      %467 = vmatpush1.msra.mxu0 %v400
      %468 = vmatprep.mubr.f32.mxu0 %v273
      %469 = vmatmul.mubr.f32.gmra.mrb[0].mxu0 %v272
      %v470 = vpop.f32.mrb[0].mxu0
      %v471 = vadd.f32 0.0, %v470
      %v472 = vpop.f32.mrb[0].mxu0
      %v473 = vadd.f32 0.0, %v472
      %474 = vmatprep.mubr.f32.mxu0 %v275
      %475 = vmatmul.mubr.f32.gmra.mrb[0].mxu0 %v274
      %v476 = vpop.f32.mrb[0].mxu0
      %v477 = vadd.f32 0.0, %v476
      %v478 = vpop.f32.mrb[0].mxu0
      %v479 = vadd.f32 0.0, %v478
      %480 = vdwg.mxu0
      %481 = vmatprep.subr.mxu0 %v279
      %482 = vmatpush1.msra.mxu0 %v278
      %483 = vmatprep.subr.mxu0 %v283
      %484 = vmatpush1.msra.mxu0 %v282
      %485 = vmatprep.subr.mxu0 %v287
      %486 = vmatpush1.msra.mxu0 %v286
      %487 = vmatprep.subr.mxu0 %v291
      %488 = vmatpush1.msra.mxu0 %v290
      %489 = vmatprep.subr.mxu0 %v295
      %490 = vmatpush1.msra.mxu0 %v294
      %491 = vmatprep.subr.mxu0 %v299
      %492 = vmatpush1.msra.mxu0 %v298
      %493 = vmatprep.subr.mxu0 %v303
      %494 = vmatpush1.msra.mxu0 %v302
      %495 = vmatprep.subr.mxu0 %v307
      %496 = vmatpush1.msra.mxu0 %v306
      %497 = vmatprep.subr.mxu0 %v311
      %498 = vmatpush1.msra.mxu0 %v310
      %499 = vmatprep.subr.mxu0 %v315
      %500 = vmatpush1.msra.mxu0 %v314
      %501 = vmatprep.subr.mxu0 %v319
      %502 = vmatpush1.msra.mxu0 %v318
      %503 = vmatprep.subr.mxu0 %v323
      %504 = vmatpush1.msra.mxu0 %v322
      %505 = vmatprep.subr.mxu0 %v327
      %506 = vmatpush1.msra.mxu0 %v326
      %507 = vmatprep.subr.mxu0 %v331
      %508 = vmatpush1.msra.mxu0 %v330
      %509 = vmatprep.subr.mxu0 %v335
      %510 = vmatpush1.msra.mxu0 %v334
      %511 = vmatprep.subr.mxu0 %v339
      %512 = vmatpush1.msra.mxu0 %v338
      %513 = vmatprep.subr.mxu0 %v343
      %514 = vmatpush1.msra.mxu0 %v342
      %515 = vmatprep.subr.mxu0 %v347
      %516 = vmatpush1.msra.mxu0 %v346
      %517 = vmatprep.subr.mxu0 %v351
      %518 = vmatpush1.msra.mxu0 %v350
      %519 = vmatprep.subr.mxu0 %v355
      %520 = vmatpush1.msra.mxu0 %v354
      %521 = vmatprep.subr.mxu0 %v359
      %522 = vmatpush1.msra.mxu0 %v358
      %523 = vmatprep.subr.mxu0 %v363
      %524 = vmatpush1.msra.mxu0 %v362
      %525 = vmatprep.subr.mxu0 %v367
      %526 = vmatpush1.msra.mxu0 %v366
      %527 = vmatprep.subr.mxu0 %v371
      %528 = vmatpush1.msra.mxu0 %v370
      %529 = vmatprep.subr.mxu0 %v375
      %530 = vmatpush1.msra.mxu0 %v374
      %531 = vmatprep.subr.mxu0 %v379
      %532 = vmatpush1.msra.mxu0 %v378
      %533 = vmatprep.subr.mxu0 %v383
      %534 = vmatpush1.msra.mxu0 %v382
      %535 = vmatprep.subr.mxu0 %v387
      %536 = vmatpush1.msra.mxu0 %v386
      %537 = vmatprep.subr.mxu0 %v391
      %538 = vmatpush1.msra.mxu0 %v390
      %539 = vmatprep.subr.mxu0 %v395
      %540 = vmatpush1.msra.mxu0 %v394
      %541 = vmatprep.subr.mxu0 %v399
      %542 = vmatpush1.msra.mxu0 %v398
      %543 = vmatprep.subr.mxu0 %v403
      %544 = vmatpush1.msra.mxu0 %v402
      %545 = vmatprep.mubr.f32.mxu0 %v273
      %546 = vmatmul.mubr.f32.gmra.mrb[0].mxu0 %v272
      %v547 = vpop.f32.mrb[0].mxu0
      %v548 = vadd.f32 0.0, %v547
      %v549 = vpop.f32.mrb[0].mxu0
      %v550 = vadd.f32 0.0, %v549
      %551 = vmatprep.mubr.f32.mxu0 %v275
      %552 = vmatmul.mubr.f32.gmra.mrb[0].mxu0 %v274
      %v553 = vpop.f32.mrb[0].mxu0
      %v554 = vadd.f32 0.0, %v553
      %v555 = vpop.f32.mrb[0].mxu0
      %v556 = vadd.f32 0.0, %v555
      %557 = vdwg.mxu0
      %v562 = vcombine.low %v471, %v473
      %v563 = vcombine.high %v471, %v473
      %v565 = vunpack.c.l.s4 1966171168
      %v566 = vunpack.c.0.s8 %v565
      %v567 = vlaneseq
      %v568 = vshrl.u32 %v567, 7
      %v569 = vsub.s32 %v566, %v568
      %v570 = vrot.slane %v562, %v569
      %v572 = vunpack.c.l.s4 1966171168
      %v573 = vunpack.c.0.s8 %v572
      %v574 = vlaneseq
      %v575 = vshrl.u32 %v574, 7
      %v576 = vsub.s32 %v573, %v575
      %v577 = vrot.slane %v563, %v576
      %v578 = vcombine.high %v570, %v570
      %v579 = vcombine.high %v577, %v577
      %v581 = vunpack.c.l.s4 1966171168
      %v582 = vunpack.c.0.s8 %v581
      %v583 = vlaneseq
      %v584 = vshrl.u32 %v583, 7
      %v585 = vsub.s32 %v582, %v584
      %v586 = vrot.slane %v570, %v585
      %v588 = vunpack.c.l.s4 1966171168
      %v589 = vunpack.c.0.s8 %v588
      %v590 = vlaneseq
      %v591 = vshrl.u32 %v590, 7
      %v592 = vsub.s32 %v589, %v591
      %v593 = vrot.slane %v577, %v592
      %v595 = vunpack.c.l.s4 1966171168
      %v596 = vunpack.c.0.s8 %v595
      %v597 = vlaneseq
      %v598 = vshrl.u32 %v597, 7
      %v599 = vsub.s32 %v596, %v598
      %v600 = vrot.slane %v578, %v599
      %v602 = vunpack.c.l.s4 1966171168
      %v603 = vunpack.c.0.s8 %v602
      %v604 = vlaneseq
      %v605 = vshrl.u32 %v604, 7
      %v606 = vsub.s32 %v603, %v605
      %v607 = vrot.slane %v579, %v606
      %v608 = vcombine.high %v586, %v586
      %v609 = vcombine.high %v593, %v593
      %v610 = vcombine.high %v600, %v600
      %v611 = vcombine.high %v607, %v607
      %v612 = vcombine.low %v477, %v479
      %v613 = vcombine.high %v477, %v479
      %v615 = vunpack.c.l.s4 1966171168
      %v616 = vunpack.c.0.s8 %v615
      %v617 = vlaneseq
      %v618 = vshrl.u32 %v617, 7
      %v619 = vsub.s32 %v616, %v618
      %v620 = vrot.slane %v612, %v619
      %v622 = vunpack.c.l.s4 1966171168
      %v623 = vunpack.c.0.s8 %v622
      %v624 = vlaneseq
      %v625 = vshrl.u32 %v624, 7
      %v626 = vsub.s32 %v623, %v625
      %v627 = vrot.slane %v613, %v626
      %v628 = vcombine.high %v620, %v620
      %v629 = vcombine.high %v627, %v627
      %v631 = vunpack.c.l.s4 1966171168
      %v632 = vunpack.c.0.s8 %v631
      %v633 = vlaneseq
      %v634 = vshrl.u32 %v633, 7
      %v635 = vsub.s32 %v632, %v634
      %v636 = vrot.slane %v620, %v635
      %v638 = vunpack.c.l.s4 1966171168
      %v639 = vunpack.c.0.s8 %v638
      %v640 = vlaneseq
      %v641 = vshrl.u32 %v640, 7
      %v642 = vsub.s32 %v639, %v641
      %v643 = vrot.slane %v627, %v642
      %v645 = vunpack.c.l.s4 1966171168
      %v646 = vunpack.c.0.s8 %v645
      %v647 = vlaneseq
      %v648 = vshrl.u32 %v647, 7
      %v649 = vsub.s32 %v646, %v648
      %v650 = vrot.slane %v628, %v649
      %v652 = vunpack.c.l.s4 1966171168
      %v653 = vunpack.c.0.s8 %v652
      %v654 = vlaneseq
      %v655 = vshrl.u32 %v654, 7
      %v656 = vsub.s32 %v653, %v655
      %v657 = vrot.slane %v629, %v656
      %v658 = vcombine.high %v636, %v636
      %v659 = vcombine.high %v643, %v643
      %v660 = vcombine.high %v650, %v650
      %v661 = vcombine.high %v657, %v657
      %v666 = vcombine.low %v548, %v550
      %v667 = vcombine.high %v548, %v550
      %v669 = vunpack.c.l.s4 1966171168
      %v670 = vunpack.c.0.s8 %v669
      %v671 = vlaneseq
      %v672 = vshrl.u32 %v671, 7
      %v673 = vsub.s32 %v670, %v672
      %v674 = vrot.slane %v666, %v673
      %v676 = vunpack.c.l.s4 1966171168
      %v677 = vunpack.c.0.s8 %v676
      %v678 = vlaneseq
      %v679 = vshrl.u32 %v678, 7
      %v680 = vsub.s32 %v677, %v679
      %v681 = vrot.slane %v667, %v680
      %v682 = vcombine.high %v674, %v674
      %v683 = vcombine.high %v681, %v681
      %v685 = vunpack.c.l.s4 1966171168
      %v686 = vunpack.c.0.s8 %v685
      %v687 = vlaneseq
      %v688 = vshrl.u32 %v687, 7
      %v689 = vsub.s32 %v686, %v688
      %v690 = vrot.slane %v674, %v689
      %v692 = vunpack.c.l.s4 1966171168
      %v693 = vunpack.c.0.s8 %v692
      %v694 = vlaneseq
      %v695 = vshrl.u32 %v694, 7
      %v696 = vsub.s32 %v693, %v695
      %v697 = vrot.slane %v681, %v696
      %v699 = vunpack.c.l.s4 1966171168
      %v700 = vunpack.c.0.s8 %v699
      %v701 = vlaneseq
      %v702 = vshrl.u32 %v701, 7
      %v703 = vsub.s32 %v700, %v702
      %v704 = vrot.slane %v682, %v703
      %v706 = vunpack.c.l.s4 1966171168
      %v707 = vunpack.c.0.s8 %v706
      %v708 = vlaneseq
      %v709 = vshrl.u32 %v708, 7
      %v710 = vsub.s32 %v707, %v709
      %v711 = vrot.slane %v683, %v710
      %v712 = vcombine.high %v690, %v690
      %v713 = vcombine.high %v697, %v697
      %v714 = vcombine.high %v704, %v704
      %v715 = vcombine.high %v711, %v711
      %v716 = vcombine.low %v554, %v556
      %v717 = vcombine.high %v554, %v556
      %v719 = vunpack.c.l.s4 1966171168
      %v720 = vunpack.c.0.s8 %v719
      %v721 = vlaneseq
      %v722 = vshrl.u32 %v721, 7
      %v723 = vsub.s32 %v720, %v722
      %v724 = vrot.slane %v716, %v723
      %v726 = vunpack.c.l.s4 1966171168
      %v727 = vunpack.c.0.s8 %v726
      %v728 = vlaneseq
      %v729 = vshrl.u32 %v728, 7
      %v730 = vsub.s32 %v727, %v729
      %v731 = vrot.slane %v717, %v730
      %v732 = vcombine.high %v724, %v724
      %v733 = vcombine.high %v731, %v731
      %v735 = vunpack.c.l.s4 1966171168
      %v736 = vunpack.c.0.s8 %v735
      %v737 = vlaneseq
      %v738 = vshrl.u32 %v737, 7
      %v739 = vsub.s32 %v736, %v738
      %v740 = vrot.slane %v724, %v739
      %v742 = vunpack.c.l.s4 1966171168
      %v743 = vunpack.c.0.s8 %v742
      %v744 = vlaneseq
      %v745 = vshrl.u32 %v744, 7
      %v746 = vsub.s32 %v743, %v745
      %v747 = vrot.slane %v731, %v746
      %v749 = vunpack.c.l.s4 1966171168
      %v750 = vunpack.c.0.s8 %v749
      %v751 = vlaneseq
      %v752 = vshrl.u32 %v751, 7
      %v753 = vsub.s32 %v750, %v752
      %v754 = vrot.slane %v732, %v753
      %v756 = vunpack.c.l.s4 1966171168
      %v757 = vunpack.c.0.s8 %v756
      %v758 = vlaneseq
      %v759 = vshrl.u32 %v758, 7
      %v760 = vsub.s32 %v757, %v759
      %v761 = vrot.slane %v733, %v760
      %v762 = vcombine.high %v740, %v740
      %v763 = vcombine.high %v747, %v747
      %v764 = vcombine.high %v754, %v754
      %v765 = vcombine.high %v761, %v761
      %v766 = vlaneseq
      %v767 = vshrl.u32 %v766, 7
      %v768 = vsub.s32 0, %v767
      %v769 = vrot.slane %v586, %v768
      %v770 = vlaneseq
      %v771 = vshrl.u32 %v770, 7
      %v772 = vsub.s32 1, %v771
      %v773 = vrot.slane %v586, %v772
      %v774 = vlaneseq
      %v775 = vshrl.u32 %v774, 7
      %v776 = vsub.s32 0, %v775
      %v777 = vrot.slane %v600, %v776
      %v778 = vlaneseq
      %v779 = vshrl.u32 %v778, 7
      %v780 = vsub.s32 1, %v779
      %v781 = vrot.slane %v600, %v780
      %v782 = vlaneseq
      %v783 = vshrl.u32 %v782, 7
      %v784 = vsub.s32 0, %v783
      %v785 = vrot.slane %v608, %v784
      %v786 = vlaneseq
      %v787 = vshrl.u32 %v786, 7
      %v788 = vsub.s32 1, %v787
      %v789 = vrot.slane %v608, %v788
      %v790 = vlaneseq
      %v791 = vshrl.u32 %v790, 7
      %v792 = vsub.s32 0, %v791
      %v793 = vrot.slane %v610, %v792
      %v794 = vlaneseq
      %v795 = vshrl.u32 %v794, 7
      %v796 = vsub.s32 1, %v795
      %v797 = vrot.slane %v610, %v796
      %v798 = vlaneseq
      %v799 = vshrl.u32 %v798, 7
      %v800 = vsub.s32 0, %v799
      %v801 = vrot.slane %v593, %v800
      %v802 = vlaneseq
      %v803 = vshrl.u32 %v802, 7
      %v804 = vsub.s32 1, %v803
      %v805 = vrot.slane %v593, %v804
      %v806 = vlaneseq
      %v807 = vshrl.u32 %v806, 7
      %v808 = vsub.s32 0, %v807
      %v809 = vrot.slane %v607, %v808
      %v810 = vlaneseq
      %v811 = vshrl.u32 %v810, 7
      %v812 = vsub.s32 1, %v811
      %v813 = vrot.slane %v607, %v812
      %v814 = vlaneseq
      %v815 = vshrl.u32 %v814, 7
      %v816 = vsub.s32 0, %v815
      %v817 = vrot.slane %v609, %v816
      %v818 = vlaneseq
      %v819 = vshrl.u32 %v818, 7
      %v820 = vsub.s32 1, %v819
      %v821 = vrot.slane %v609, %v820
      %v822 = vlaneseq
      %v823 = vshrl.u32 %v822, 7
      %v824 = vsub.s32 0, %v823
      %v825 = vrot.slane %v611, %v824
      %v826 = vlaneseq
      %v827 = vshrl.u32 %v826, 7
      %v828 = vsub.s32 1, %v827
      %v829 = vrot.slane %v611, %v828
      %v830 = vlaneseq
      %v831 = vshrl.u32 %v830, 7
      %v832 = vsub.s32 0, %v831
      %v833 = vrot.slane %v636, %v832
      %v834 = vlaneseq
      %v835 = vshrl.u32 %v834, 7
      %v836 = vsub.s32 1, %v835
      %v837 = vrot.slane %v636, %v836
      %v838 = vlaneseq
      %v839 = vshrl.u32 %v838, 7
      %v840 = vsub.s32 0, %v839
      %v841 = vrot.slane %v650, %v840
      %v842 = vlaneseq
      %v843 = vshrl.u32 %v842, 7
      %v844 = vsub.s32 1, %v843
      %v845 = vrot.slane %v650, %v844
      %v846 = vlaneseq
      %v847 = vshrl.u32 %v846, 7
      %v848 = vsub.s32 0, %v847
      %v849 = vrot.slane %v658, %v848
      %v850 = vlaneseq
      %v851 = vshrl.u32 %v850, 7
      %v852 = vsub.s32 1, %v851
      %v853 = vrot.slane %v658, %v852
      %v854 = vlaneseq
      %v855 = vshrl.u32 %v854, 7
      %v856 = vsub.s32 0, %v855
      %v857 = vrot.slane %v660, %v856
      %v858 = vlaneseq
      %v859 = vshrl.u32 %v858, 7
      %v860 = vsub.s32 1, %v859
      %v861 = vrot.slane %v660, %v860
      %v862 = vlaneseq
      %v863 = vshrl.u32 %v862, 7
      %v864 = vsub.s32 0, %v863
      %v865 = vrot.slane %v643, %v864
      %v866 = vlaneseq
      %v867 = vshrl.u32 %v866, 7
      %v868 = vsub.s32 1, %v867
      %v869 = vrot.slane %v643, %v868
      %v870 = vlaneseq
      %v871 = vshrl.u32 %v870, 7
      %v872 = vsub.s32 0, %v871
      %v873 = vrot.slane %v657, %v872
      %v874 = vlaneseq
      %v875 = vshrl.u32 %v874, 7
      %v876 = vsub.s32 1, %v875
      %v877 = vrot.slane %v657, %v876
      %v878 = vlaneseq
      %v879 = vshrl.u32 %v878, 7
      %v880 = vsub.s32 0, %v879
      %v881 = vrot.slane %v659, %v880
      %v882 = vlaneseq
      %v883 = vshrl.u32 %v882, 7
      %v884 = vsub.s32 1, %v883
      %v885 = vrot.slane %v659, %v884
      %v886 = vlaneseq
      %v887 = vshrl.u32 %v886, 7
      %v888 = vsub.s32 0, %v887
      %v889 = vrot.slane %v661, %v888
      %v890 = vlaneseq
      %v891 = vshrl.u32 %v890, 7
      %v892 = vsub.s32 1, %v891
      %v893 = vrot.slane %v661, %v892
      %v926 = vlaneseq
      %v927 = vshrl.u32 %v926, 7
      %v928 = vsub.s32 0, %v927
      %v929 = vrot.slane %v690, %v928
      %v930 = vlaneseq
      %v931 = vshrl.u32 %v930, 7
      %v932 = vsub.s32 1, %v931
      %v933 = vrot.slane %v690, %v932
      %v934 = vlaneseq
      %v935 = vshrl.u32 %v934, 7
      %v936 = vsub.s32 0, %v935
      %v937 = vrot.slane %v704, %v936
      %v938 = vlaneseq
      %v939 = vshrl.u32 %v938, 7
      %v940 = vsub.s32 1, %v939
      %v941 = vrot.slane %v704, %v940
      %v942 = vlaneseq
      %v943 = vshrl.u32 %v942, 7
      %v944 = vsub.s32 0, %v943
      %v945 = vrot.slane %v712, %v944
      %v946 = vlaneseq
      %v947 = vshrl.u32 %v946, 7
      %v948 = vsub.s32 1, %v947
      %v949 = vrot.slane %v712, %v948
      %v950 = vlaneseq
      %v951 = vshrl.u32 %v950, 7
      %v952 = vsub.s32 0, %v951
      %v953 = vrot.slane %v714, %v952
      %v954 = vlaneseq
      %v955 = vshrl.u32 %v954, 7
      %v956 = vsub.s32 1, %v955
      %v957 = vrot.slane %v714, %v956
      %v958 = vlaneseq
      %v959 = vshrl.u32 %v958, 7
      %v960 = vsub.s32 0, %v959
      %v961 = vrot.slane %v697, %v960
      %v962 = vlaneseq
      %v963 = vshrl.u32 %v962, 7
      %v964 = vsub.s32 1, %v963
      %v965 = vrot.slane %v697, %v964
      %v966 = vlaneseq
      %v967 = vshrl.u32 %v966, 7
      %v968 = vsub.s32 0, %v967
      %v969 = vrot.slane %v711, %v968
      %v970 = vlaneseq
      %v971 = vshrl.u32 %v970, 7
      %v972 = vsub.s32 1, %v971
      %v973 = vrot.slane %v711, %v972
      %v974 = vlaneseq
      %v975 = vshrl.u32 %v974, 7
      %v976 = vsub.s32 0, %v975
      %v977 = vrot.slane %v713, %v976
      %v978 = vlaneseq
      %v979 = vshrl.u32 %v978, 7
      %v980 = vsub.s32 1, %v979
      %v981 = vrot.slane %v713, %v980
      %v982 = vlaneseq
      %v983 = vshrl.u32 %v982, 7
      %v984 = vsub.s32 0, %v983
      %v985 = vrot.slane %v715, %v984
      %v986 = vlaneseq
      %v987 = vshrl.u32 %v986, 7
      %v988 = vsub.s32 1, %v987
      %v989 = vrot.slane %v715, %v988
      %v990 = vlaneseq
      %v991 = vshrl.u32 %v990, 7
      %v992 = vsub.s32 0, %v991
      %v993 = vrot.slane %v740, %v992
      %v994 = vlaneseq
      %v995 = vshrl.u32 %v994, 7
      %v996 = vsub.s32 1, %v995
      %v997 = vrot.slane %v740, %v996
      %v998 = vlaneseq
      %v999 = vshrl.u32 %v998, 7
      %v1000 = vsub.s32 0, %v999
      %v1001 = vrot.slane %v754, %v1000
      %v1002 = vlaneseq
      %v1003 = vshrl.u32 %v1002, 7
      %v1004 = vsub.s32 1, %v1003
      %v1005 = vrot.slane %v754, %v1004
      %v1006 = vlaneseq
      %v1007 = vshrl.u32 %v1006, 7
      %v1008 = vsub.s32 0, %v1007
      %v1009 = vrot.slane %v762, %v1008
      %v1010 = vlaneseq
      %v1011 = vshrl.u32 %v1010, 7
      %v1012 = vsub.s32 1, %v1011
      %v1013 = vrot.slane %v762, %v1012
      %v1014 = vlaneseq
      %v1015 = vshrl.u32 %v1014, 7
      %v1016 = vsub.s32 0, %v1015
      %v1017 = vrot.slane %v764, %v1016
      %v1018 = vlaneseq
      %v1019 = vshrl.u32 %v1018, 7
      %v1020 = vsub.s32 1, %v1019
      %v1021 = vrot.slane %v764, %v1020
      %v1022 = vlaneseq
      %v1023 = vshrl.u32 %v1022, 7
      %v1024 = vsub.s32 0, %v1023
      %v1025 = vrot.slane %v747, %v1024
      %v1026 = vlaneseq
      %v1027 = vshrl.u32 %v1026, 7
      %v1028 = vsub.s32 1, %v1027
      %v1029 = vrot.slane %v747, %v1028
      %v1030 = vlaneseq
      %v1031 = vshrl.u32 %v1030, 7
      %v1032 = vsub.s32 0, %v1031
      %v1033 = vrot.slane %v761, %v1032
      %v1034 = vlaneseq
      %v1035 = vshrl.u32 %v1034, 7
      %v1036 = vsub.s32 1, %v1035
      %v1037 = vrot.slane %v761, %v1036
      %v1038 = vlaneseq
      %v1039 = vshrl.u32 %v1038, 7
      %v1040 = vsub.s32 0, %v1039
      %v1041 = vrot.slane %v763, %v1040
      %v1042 = vlaneseq
      %v1043 = vshrl.u32 %v1042, 7
      %v1044 = vsub.s32 1, %v1043
      %v1045 = vrot.slane %v763, %v1044
      %v1046 = vlaneseq
      %v1047 = vshrl.u32 %v1046, 7
      %v1048 = vsub.s32 0, %v1047
      %v1049 = vrot.slane %v765, %v1048
      %v1050 = vlaneseq
      %v1051 = vshrl.u32 %v1050, 7
      %v1052 = vsub.s32 1, %v1051
      %v1053 = vrot.slane %v765, %v1052
      %vm1086 = vcmask 1040384
      %v1087 = vsel %vm1086, %v769, %v929
      %v1088 = vsel %vm1086, %v773, %v933
      %v1089 = vsel %vm1086, %v777, %v937
      %v1090 = vsel %vm1086, %v781, %v941
      %v1091 = vsel %vm1086, %v785, %v945
      %v1092 = vsel %vm1086, %v789, %v949
      %v1093 = vsel %vm1086, %v793, %v953
      %v1094 = vsel %vm1086, %v797, %v957
      %v1095 = vsel %vm1086, %v801, %v961
      %v1096 = vsel %vm1086, %v805, %v965
      %v1097 = vsel %vm1086, %v809, %v969
      %v1098 = vsel %vm1086, %v813, %v973
      %v1099 = vsel %vm1086, %v817, %v977
      %v1100 = vsel %vm1086, %v821, %v981
      %v1101 = vsel %vm1086, %v825, %v985
      %v1102 = vsel %vm1086, %v829, %v989
      %v1103 = vsel %vm1086, %v833, %v993
      %v1104 = vsel %vm1086, %v837, %v997
      %v1105 = vsel %vm1086, %v841, %v1001
      %v1106 = vsel %vm1086, %v845, %v1005
      %v1107 = vsel %vm1086, %v849, %v1009
      %v1108 = vsel %vm1086, %v853, %v1013
      %v1109 = vsel %vm1086, %v857, %v1017
      %v1110 = vsel %vm1086, %v861, %v1021
      %v1111 = vsel %vm1086, %v865, %v1025
      %v1112 = vsel %vm1086, %v869, %v1029
      %v1113 = vsel %vm1086, %v873, %v1033
      %v1114 = vsel %vm1086, %v877, %v1037
      %v1115 = vsel %vm1086, %v881, %v1041
      %v1116 = vsel %vm1086, %v885, %v1045
      %v1117 = vsel %vm1086, %v889, %v1049
      %v1118 = vsel %vm1086, %v893, %v1053
      %v1151 = vcombine.low %v1087, %v1088
      %v1153 = vunpack.c.l.s4 1983009808
      %v1154 = vunpack.c.0.s8 %v1153
      %v1155 = vlaneseq
      %v1156 = vshrl.u32 %v1155, 7
      %v1157 = vsub.s32 %v1154, %v1156
      %v1158 = vrot.slane %v1151, %v1157
      %v1159 = vcombine.low %v1089, %v1090
      %v1161 = vunpack.c.l.s4 1983009808
      %v1162 = vunpack.c.0.s8 %v1161
      %v1163 = vlaneseq
      %v1164 = vshrl.u32 %v1163, 7
      %v1165 = vsub.s32 %v1162, %v1164
      %v1166 = vrot.slane %v1159, %v1165
      %v1167 = vcombine.low %v1091, %v1092
      %v1169 = vunpack.c.l.s4 1983009808
      %v1170 = vunpack.c.0.s8 %v1169
      %v1171 = vlaneseq
      %v1172 = vshrl.u32 %v1171, 7
      %v1173 = vsub.s32 %v1170, %v1172
      %v1174 = vrot.slane %v1167, %v1173
      %v1175 = vcombine.low %v1093, %v1094
      %v1177 = vunpack.c.l.s4 1983009808
      %v1178 = vunpack.c.0.s8 %v1177
      %v1179 = vlaneseq
      %v1180 = vshrl.u32 %v1179, 7
      %v1181 = vsub.s32 %v1178, %v1180
      %v1182 = vrot.slane %v1175, %v1181
      %v1183 = vcombine.low %v1095, %v1096
      %v1185 = vunpack.c.l.s4 1983009808
      %v1186 = vunpack.c.0.s8 %v1185
      %v1187 = vlaneseq
      %v1188 = vshrl.u32 %v1187, 7
      %v1189 = vsub.s32 %v1186, %v1188
      %v1190 = vrot.slane %v1183, %v1189
      %v1191 = vcombine.low %v1097, %v1098
      %v1193 = vunpack.c.l.s4 1983009808
      %v1194 = vunpack.c.0.s8 %v1193
      %v1195 = vlaneseq
      %v1196 = vshrl.u32 %v1195, 7
      %v1197 = vsub.s32 %v1194, %v1196
      %v1198 = vrot.slane %v1191, %v1197
      %v1199 = vcombine.low %v1099, %v1100
      %v1201 = vunpack.c.l.s4 1983009808
      %v1202 = vunpack.c.0.s8 %v1201
      %v1203 = vlaneseq
      %v1204 = vshrl.u32 %v1203, 7
      %v1205 = vsub.s32 %v1202, %v1204
      %v1206 = vrot.slane %v1199, %v1205
      %v1207 = vcombine.low %v1101, %v1102
      %v1209 = vunpack.c.l.s4 1983009808
      %v1210 = vunpack.c.0.s8 %v1209
      %v1211 = vlaneseq
      %v1212 = vshrl.u32 %v1211, 7
      %v1213 = vsub.s32 %v1210, %v1212
      %v1214 = vrot.slane %v1207, %v1213
      %v1215 = vcombine.low %v1103, %v1104
      %v1217 = vunpack.c.l.s4 1983009808
      %v1218 = vunpack.c.0.s8 %v1217
      %v1219 = vlaneseq
      %v1220 = vshrl.u32 %v1219, 7
      %v1221 = vsub.s32 %v1218, %v1220
      %v1222 = vrot.slane %v1215, %v1221
      %v1223 = vcombine.low %v1105, %v1106
      %v1225 = vunpack.c.l.s4 1983009808
      %v1226 = vunpack.c.0.s8 %v1225
      %v1227 = vlaneseq
      %v1228 = vshrl.u32 %v1227, 7
      %v1229 = vsub.s32 %v1226, %v1228
      %v1230 = vrot.slane %v1223, %v1229
      %v1231 = vcombine.low %v1107, %v1108
      %v1233 = vunpack.c.l.s4 1983009808
      %v1234 = vunpack.c.0.s8 %v1233
      %v1235 = vlaneseq
      %v1236 = vshrl.u32 %v1235, 7
      %v1237 = vsub.s32 %v1234, %v1236
      %v1238 = vrot.slane %v1231, %v1237
      %v1239 = vcombine.low %v1109, %v1110
      %v1241 = vunpack.c.l.s4 1983009808
      %v1242 = vunpack.c.0.s8 %v1241
      %v1243 = vlaneseq
      %v1244 = vshrl.u32 %v1243, 7
      %v1245 = vsub.s32 %v1242, %v1244
      %v1246 = vrot.slane %v1239, %v1245
      %v1247 = vcombine.low %v1111, %v1112
      %v1249 = vunpack.c.l.s4 1983009808
      %v1250 = vunpack.c.0.s8 %v1249
      %v1251 = vlaneseq
      %v1252 = vshrl.u32 %v1251, 7
      %v1253 = vsub.s32 %v1250, %v1252
      %v1254 = vrot.slane %v1247, %v1253
      %v1255 = vcombine.low %v1113, %v1114
      %v1257 = vunpack.c.l.s4 1983009808
      %v1258 = vunpack.c.0.s8 %v1257
      %v1259 = vlaneseq
      %v1260 = vshrl.u32 %v1259, 7
      %v1261 = vsub.s32 %v1258, %v1260
      %v1262 = vrot.slane %v1255, %v1261
      %v1263 = vcombine.low %v1115, %v1116
      %v1265 = vunpack.c.l.s4 1983009808
      %v1266 = vunpack.c.0.s8 %v1265
      %v1267 = vlaneseq
      %v1268 = vshrl.u32 %v1267, 7
      %v1269 = vsub.s32 %v1266, %v1268
      %v1270 = vrot.slane %v1263, %v1269
      %v1271 = vcombine.low %v1117, %v1118
      %v1273 = vunpack.c.l.s4 1983009808
      %v1274 = vunpack.c.0.s8 %v1273
      %v1275 = vlaneseq
      %v1276 = vshrl.u32 %v1275, 7
      %v1277 = vsub.s32 %v1274, %v1276
      %v1278 = vrot.slane %v1271, %v1277
      %v1295 = vld [vmem:[%s4] sm:$0x3]
      %v1297 = vlaneseq
      %v1298 = vshrl.u32 %v1297, 7
      %v1299 = vsub.s32 0, %v1298
      %v1300 = vrot.slane %v1295, %v1299
      %v1301 = vlaneseq
      %v1302 = vshrl.u32 %v1301, 7
      %v1303 = vsub.s32 1, %v1302
      %v1304 = vrot.slane %v1295, %v1303
      %v1305 = vcombine.low %v1300, %v1304
      %v1306 = vcombine.high %v1300, %v1304
      %v1308 = vunpack.c.l.s4 1983009808
      %v1309 = vunpack.c.0.s8 %v1308
      %v1310 = vlaneseq
      %v1311 = vshrl.u32 %v1310, 7
      %v1312 = vsub.s32 %v1309, %v1311
      %v1313 = vrot.slane %v1305, %v1312
      %v1315 = vunpack.c.l.s4 1983009808
      %v1316 = vunpack.c.0.s8 %v1315
      %v1317 = vlaneseq
      %v1318 = vshrl.u32 %v1317, 7
      %v1319 = vsub.s32 %v1316, %v1318
      %v1320 = vrot.slane %v1306, %v1319
      %v1321 = vcombine.high %v1313, %v1313
      %v1322 = vcombine.high %v1320, %v1320
      %v1327 = vadd.f32 %v1158, %v1313
      %v1328 = vadd.f32 %v1166, %v1321
      %v1329 = vadd.f32 %v1174, %v1320
      %v1330 = vadd.f32 %v1182, %v1322
      %v1331 = vadd.f32 %v1190, %v1313
      %v1332 = vadd.f32 %v1198, %v1321
      %v1333 = vadd.f32 %v1206, %v1320
      %v1334 = vadd.f32 %v1214, %v1322
      %v1335 = vadd.f32 %v1222, %v1313
      %v1336 = vadd.f32 %v1230, %v1321
      %v1337 = vadd.f32 %v1238, %v1320
      %v1338 = vadd.f32 %v1246, %v1322
      %v1339 = vadd.f32 %v1254, %v1313
      %v1340 = vadd.f32 %v1262, %v1321
      %v1341 = vadd.f32 %v1270, %v1320
      %v1342 = vadd.f32 %v1278, %v1322
      %vm1343 = vcmp.ge.f32.partialorder %v1327, 0.0
      %vm1344 = vcmp.ge.f32.partialorder %v1328, 0.0
      %vm1345 = vcmp.ge.f32.partialorder %v1329, 0.0
      %vm1346 = vcmp.ge.f32.partialorder %v1330, 0.0
      %vm1347 = vcmp.ge.f32.partialorder %v1331, 0.0
      %vm1348 = vcmp.ge.f32.partialorder %v1332, 0.0
      %vm1349 = vcmp.ge.f32.partialorder %v1333, 0.0
      %vm1350 = vcmp.ge.f32.partialorder %v1334, 0.0
      %vm1351 = vcmp.ge.f32.partialorder %v1335, 0.0
      %vm1352 = vcmp.ge.f32.partialorder %v1336, 0.0
      %vm1353 = vcmp.ge.f32.partialorder %v1337, 0.0
      %vm1354 = vcmp.ge.f32.partialorder %v1338, 0.0
      %vm1355 = vcmp.ge.f32.partialorder %v1339, 0.0
      %vm1356 = vcmp.ge.f32.partialorder %v1340, 0.0
      %vm1357 = vcmp.ge.f32.partialorder %v1341, 0.0
      %vm1358 = vcmp.ge.f32.partialorder %v1342, 0.0
      %v1359 = vmul.f32 %v1327, 0.01
      %v1360 = vmul.f32 %v1328, 0.01
      %v1361 = vmul.f32 %v1329, 0.01
      %v1362 = vmul.f32 %v1330, 0.01
      %v1363 = vmul.f32 %v1331, 0.01
      %v1364 = vmul.f32 %v1332, 0.01
      %v1365 = vmul.f32 %v1333, 0.01
      %v1366 = vmul.f32 %v1334, 0.01
      %v1367 = vmul.f32 %v1335, 0.01
      %v1368 = vmul.f32 %v1336, 0.01
      %v1369 = vmul.f32 %v1337, 0.01
      %v1370 = vmul.f32 %v1338, 0.01
      %v1371 = vmul.f32 %v1339, 0.01
      %v1372 = vmul.f32 %v1340, 0.01
      %v1373 = vmul.f32 %v1341, 0.01
      %v1374 = vmul.f32 %v1342, 0.01
      %v1375 = vsel %vm1343, %v1327, %v1359
      %v1376 = vsel %vm1344, %v1328, %v1360
      %v1377 = vsel %vm1345, %v1329, %v1361
      %v1378 = vsel %vm1346, %v1330, %v1362
      %v1379 = vsel %vm1347, %v1331, %v1363
      %v1380 = vsel %vm1348, %v1332, %v1364
      %v1381 = vsel %vm1349, %v1333, %v1365
      %v1382 = vsel %vm1350, %v1334, %v1366
      %v1383 = vsel %vm1351, %v1335, %v1367
      %v1384 = vsel %vm1352, %v1336, %v1368
      %v1385 = vsel %vm1353, %v1337, %v1369
      %v1386 = vsel %vm1354, %v1338, %v1370
      %v1387 = vsel %vm1355, %v1339, %v1371
      %v1388 = vsel %vm1356, %v1340, %v1372
      %v1389 = vsel %vm1357, %v1341, %v1373
      %v1390 = vsel %vm1358, %v1342, %v1374
      %v1391 = vld [vmem:[%s266] sm:$0xff]
      %v1392 = vld [vmem:[%s266 + $0x8] sm:$0xff]
      %v1393 = vld [vmem:[%s266 + $0x10] sm:$0xff]
      %v1394 = vld [vmem:[%s266 + $0x18] sm:$0xff]
      %v1395 = vld [vmem:[%s266 + $0x20] sm:$0xff]
      %v1396 = vld [vmem:[%s266 + $0x28] sm:$0xff]
      %v1397 = vld [vmem:[%s266 + $0x30] sm:$0xff]
      %v1398 = vld [vmem:[%s266 + $0x38] sm:$0xff]
      %v1407 = vcombine.low %v1391, %v1392
      %v1408 = vcombine.high %v1391, %v1392
      %v1410 = vunpack.c.l.s4 1983009808
      %v1411 = vunpack.c.0.s8 %v1410
      %v1412 = vlaneseq
      %v1413 = vshrl.u32 %v1412, 7
      %v1414 = vsub.s32 %v1411, %v1413
      %v1415 = vrot.slane %v1407, %v1414
      %v1417 = vunpack.c.l.s4 1983009808
      %v1418 = vunpack.c.0.s8 %v1417
      %v1419 = vlaneseq
      %v1420 = vshrl.u32 %v1419, 7
      %v1421 = vsub.s32 %v1418, %v1420
      %v1422 = vrot.slane %v1408, %v1421
      %v1423 = vcombine.high %v1415, %v1415
      %v1424 = vcombine.high %v1422, %v1422
      %v1425 = vcombine.low %v1393, %v1394
      %v1426 = vcombine.high %v1393, %v1394
      %v1428 = vunpack.c.l.s4 1983009808
      %v1429 = vunpack.c.0.s8 %v1428
      %v1430 = vlaneseq
      %v1431 = vshrl.u32 %v1430, 7
      %v1432 = vsub.s32 %v1429, %v1431
      %v1433 = vrot.slane %v1425, %v1432
      %v1435 = vunpack.c.l.s4 1983009808
      %v1436 = vunpack.c.0.s8 %v1435
      %v1437 = vlaneseq
      %v1438 = vshrl.u32 %v1437, 7
      %v1439 = vsub.s32 %v1436, %v1438
      %v1440 = vrot.slane %v1426, %v1439
      %v1441 = vcombine.high %v1433, %v1433
      %v1442 = vcombine.high %v1440, %v1440
      %v1443 = vcombine.low %v1395, %v1396
      %v1444 = vcombine.high %v1395, %v1396
      %v1446 = vunpack.c.l.s4 1983009808
      %v1447 = vunpack.c.0.s8 %v1446
      %v1448 = vlaneseq
      %v1449 = vshrl.u32 %v1448, 7
      %v1450 = vsub.s32 %v1447, %v1449
      %v1451 = vrot.slane %v1443, %v1450
      %v1453 = vunpack.c.l.s4 1983009808
      %v1454 = vunpack.c.0.s8 %v1453
      %v1455 = vlaneseq
      %v1456 = vshrl.u32 %v1455, 7
      %v1457 = vsub.s32 %v1454, %v1456
      %v1458 = vrot.slane %v1444, %v1457
      %v1459 = vcombine.high %v1451, %v1451
      %v1460 = vcombine.high %v1458, %v1458
      %v1461 = vcombine.low %v1397, %v1398
      %v1462 = vcombine.high %v1397, %v1398
      %v1464 = vunpack.c.l.s4 1983009808
      %v1465 = vunpack.c.0.s8 %v1464
      %v1466 = vlaneseq
      %v1467 = vshrl.u32 %v1466, 7
      %v1468 = vsub.s32 %v1465, %v1467
      %v1469 = vrot.slane %v1461, %v1468
      %v1471 = vunpack.c.l.s4 1983009808
      %v1472 = vunpack.c.0.s8 %v1471
      %v1473 = vlaneseq
      %v1474 = vshrl.u32 %v1473, 7
      %v1475 = vsub.s32 %v1472, %v1474
      %v1476 = vrot.slane %v1462, %v1475
      %v1477 = vcombine.high %v1469, %v1469
      %v1478 = vcombine.high %v1476, %v1476
      %v1495 = vadd.f32 %v1375, %v1415
      %v1496 = vadd.f32 %v1376, %v1423
      %v1497 = vadd.f32 %v1377, %v1422
      %v1498 = vadd.f32 %v1378, %v1424
      %v1499 = vadd.f32 %v1379, %v1433
      %v1500 = vadd.f32 %v1380, %v1441
      %v1501 = vadd.f32 %v1381, %v1440
      %v1502 = vadd.f32 %v1382, %v1442
      %v1503 = vadd.f32 %v1383, %v1451
      %v1504 = vadd.f32 %v1384, %v1459
      %v1505 = vadd.f32 %v1385, %v1458
      %v1506 = vadd.f32 %v1386, %v1460
      %v1507 = vadd.f32 %v1387, %v1469
      %v1508 = vadd.f32 %v1388, %v1477
      %v1509 = vadd.f32 %v1389, %v1476
      %v1510 = vadd.f32 %v1390, %v1478
      %v1511 = vld [vmem:[%s3] sm:$0xff]
      %v1512 = vld [vmem:[%s3 + $0x8] sm:$0xff]
      %v1513 = vld [vmem:[%s3 + $0x10] sm:$0xff]
      %v1514 = vld [vmem:[%s3 + $0x18] sm:$0xff]
      %v1515 = vld [vmem:[%s3 + $0x20] sm:$0xff]
      %v1516 = vld [vmem:[%s3 + $0x28] sm:$0xff]
      %v1517 = vld [vmem:[%s3 + $0x30] sm:$0xff]
      %v1518 = vld [vmem:[%s3 + $0x38] sm:$0xff]
      %v1519 = vld [vmem:[%s3 + $0x40] sm:$0xff]
      %v1520 = vld [vmem:[%s3 + $0x48] sm:$0xff]
      %v1521 = vld [vmem:[%s3 + $0x50] sm:$0xff]
      %v1522 = vld [vmem:[%s3 + $0x58] sm:$0xff]
      %v1523 = vld [vmem:[%s3 + $0x60] sm:$0xff]
      %v1524 = vld [vmem:[%s3 + $0x68] sm:$0xff]
      %v1525 = vld [vmem:[%s3 + $0x70] sm:$0xff]
      %v1526 = vld [vmem:[%s3 + $0x78] sm:$0xff]
      %v1527 = vld [vmem:[%s3 + $0x80] sm:$0xff]
      %v1528 = vld [vmem:[%s3 + $0x88] sm:$0xff]
      %v1529 = vld [vmem:[%s3 + $0x90] sm:$0xff]
      %v1530 = vld [vmem:[%s3 + $0x98] sm:$0xff]
      %v1531 = vld [vmem:[%s3 + $0xa0] sm:$0xff]
      %v1532 = vld [vmem:[%s3 + $0xa8] sm:$0xff]
      %v1533 = vld [vmem:[%s3 + $0xb0] sm:$0xff]
      %v1534 = vld [vmem:[%s3 + $0xb8] sm:$0xff]
      %v1535 = vld [vmem:[%s3 + $0xc0] sm:$0xff]
      %v1536 = vld [vmem:[%s3 + $0xc8] sm:$0xff]
      %v1537 = vld [vmem:[%s3 + $0xd0] sm:$0xff]
      %v1538 = vld [vmem:[%s3 + $0xd8] sm:$0xff]
      %v1539 = vld [vmem:[%s3 + $0xe0] sm:$0xff]
      %v1540 = vld [vmem:[%s3 + $0xe8] sm:$0xff]
      %v1541 = vld [vmem:[%s3 + $0xf0] sm:$0xff]
      %v1542 = vld [vmem:[%s3 + $0xf8] sm:$0xff]
      %v1543 = vld [vmem:[%s3 + $0x100] sm:$0xff]
      %v1544 = vld [vmem:[%s3 + $0x108] sm:$0xff]
      %v1545 = vld [vmem:[%s3 + $0x110] sm:$0xff]
      %v1546 = vld [vmem:[%s3 + $0x118] sm:$0xff]
      %v1547 = vld [vmem:[%s3 + $0x120] sm:$0xff]
      %v1548 = vld [vmem:[%s3 + $0x128] sm:$0xff]
      %v1549 = vld [vmem:[%s3 + $0x130] sm:$0xff]
      %v1550 = vld [vmem:[%s3 + $0x138] sm:$0xff]
      %v1551 = vld [vmem:[%s3 + $0x140] sm:$0xff]
      %v1552 = vld [vmem:[%s3 + $0x148] sm:$0xff]
      %v1553 = vld [vmem:[%s3 + $0x150] sm:$0xff]
      %v1554 = vld [vmem:[%s3 + $0x158] sm:$0xff]
      %v1555 = vld [vmem:[%s3 + $0x160] sm:$0xff]
      %v1556 = vld [vmem:[%s3 + $0x168] sm:$0xff]
      %v1557 = vld [vmem:[%s3 + $0x170] sm:$0xff]
      %v1558 = vld [vmem:[%s3 + $0x178] sm:$0xff]
      %v1559 = vld [vmem:[%s3 + $0x180] sm:$0xff]
      %v1560 = vld [vmem:[%s3 + $0x188] sm:$0xff]
      %v1561 = vld [vmem:[%s3 + $0x190] sm:$0xff]
      %v1562 = vld [vmem:[%s3 + $0x198] sm:$0xff]
      %v1563 = vld [vmem:[%s3 + $0x1a0] sm:$0xff]
      %v1564 = vld [vmem:[%s3 + $0x1a8] sm:$0xff]
      %v1565 = vld [vmem:[%s3 + $0x1b0] sm:$0xff]
      %v1566 = vld [vmem:[%s3 + $0x1b8] sm:$0xff]
      %v1567 = vld [vmem:[%s3 + $0x1c0] sm:$0xff]
      %v1568 = vld [vmem:[%s3 + $0x1c8] sm:$0xff]
      %v1569 = vld [vmem:[%s3 + $0x1d0] sm:$0xff]
      %v1570 = vld [vmem:[%s3 + $0x1d8] sm:$0xff]
      %v1571 = vld [vmem:[%s3 + $0x1e0] sm:$0xff]
      %v1572 = vld [vmem:[%s3 + $0x1e8] sm:$0xff]
      %v1573 = vld [vmem:[%s3 + $0x1f0] sm:$0xff]
      %v1574 = vld [vmem:[%s3 + $0x1f8] sm:$0xff]
      %v1575 = vld [vmem:[%s3 + $0x200] sm:$0xff]
      %v1576 = vld [vmem:[%s3 + $0x208] sm:$0xff]
      %v1577 = vld [vmem:[%s3 + $0x210] sm:$0xff]
      %v1578 = vld [vmem:[%s3 + $0x218] sm:$0xff]
      %v1579 = vld [vmem:[%s3 + $0x220] sm:$0xff]
      %v1580 = vld [vmem:[%s3 + $0x228] sm:$0xff]
      %v1581 = vld [vmem:[%s3 + $0x230] sm:$0xff]
      %v1582 = vld [vmem:[%s3 + $0x238] sm:$0xff]
      %v1583 = vld [vmem:[%s3 + $0x240] sm:$0xff]
      %v1584 = vld [vmem:[%s3 + $0x248] sm:$0xff]
      %v1585 = vld [vmem:[%s3 + $0x250] sm:$0xff]
      %v1586 = vld [vmem:[%s3 + $0x258] sm:$0xff]
      %v1587 = vld [vmem:[%s3 + $0x260] sm:$0xff]
      %v1588 = vld [vmem:[%s3 + $0x268] sm:$0xff]
      %v1589 = vld [vmem:[%s3 + $0x270] sm:$0xff]
      %v1590 = vld [vmem:[%s3 + $0x278] sm:$0xff]
      %v1591 = vld [vmem:[%s3 + $0x280] sm:$0xff]
      %v1592 = vld [vmem:[%s3 + $0x288] sm:$0xff]
      %v1593 = vld [vmem:[%s3 + $0x290] sm:$0xff]
      %v1594 = vld [vmem:[%s3 + $0x298] sm:$0xff]
      %v1595 = vld [vmem:[%s3 + $0x2a0] sm:$0xff]
      %v1596 = vld [vmem:[%s3 + $0x2a8] sm:$0xff]
      %v1597 = vld [vmem:[%s3 + $0x2b0] sm:$0xff]
      %v1598 = vld [vmem:[%s3 + $0x2b8] sm:$0xff]
      %v1599 = vld [vmem:[%s3 + $0x2c0] sm:$0xff]
      %v1600 = vld [vmem:[%s3 + $0x2c8] sm:$0xff]
      %v1601 = vld [vmem:[%s3 + $0x2d0] sm:$0xff]
      %v1602 = vld [vmem:[%s3 + $0x2d8] sm:$0xff]
      %v1603 = vld [vmem:[%s3 + $0x2e0] sm:$0xff]
      %v1604 = vld [vmem:[%s3 + $0x2e8] sm:$0xff]
      %v1605 = vld [vmem:[%s3 + $0x2f0] sm:$0xff]
      %v1606 = vld [vmem:[%s3 + $0x2f8] sm:$0xff]
      %v1607 = vld [vmem:[%s3 + $0x300] sm:$0xff]
      %v1608 = vld [vmem:[%s3 + $0x308] sm:$0xff]
      %v1609 = vld [vmem:[%s3 + $0x310] sm:$0xff]
      %v1610 = vld [vmem:[%s3 + $0x318] sm:$0xff]
      %v1611 = vld [vmem:[%s3 + $0x320] sm:$0xff]
      %v1612 = vld [vmem:[%s3 + $0x328] sm:$0xff]
      %v1613 = vld [vmem:[%s3 + $0x330] sm:$0xff]
      %v1614 = vld [vmem:[%s3 + $0x338] sm:$0xff]
      %v1615 = vld [vmem:[%s3 + $0x340] sm:$0xff]
      %v1616 = vld [vmem:[%s3 + $0x348] sm:$0xff]
      %v1617 = vld [vmem:[%s3 + $0x350] sm:$0xff]
      %v1618 = vld [vmem:[%s3 + $0x358] sm:$0xff]
      %v1619 = vld [vmem:[%s3 + $0x360] sm:$0xff]
      %v1620 = vld [vmem:[%s3 + $0x368] sm:$0xff]
      %v1621 = vld [vmem:[%s3 + $0x370] sm:$0xff]
      %v1622 = vld [vmem:[%s3 + $0x378] sm:$0xff]
      %v1623 = vld [vmem:[%s3 + $0x380] sm:$0xff]
      %v1624 = vld [vmem:[%s3 + $0x388] sm:$0xff]
      %v1625 = vld [vmem:[%s3 + $0x390] sm:$0xff]
      %v1626 = vld [vmem:[%s3 + $0x398] sm:$0xff]
      %v1627 = vld [vmem:[%s3 + $0x3a0] sm:$0xff]
      %v1628 = vld [vmem:[%s3 + $0x3a8] sm:$0xff]
      %v1629 = vld [vmem:[%s3 + $0x3b0] sm:$0xff]
      %v1630 = vld [vmem:[%s3 + $0x3b8] sm:$0xff]
      %v1631 = vld [vmem:[%s3 + $0x3c0] sm:$0xff]
      %v1632 = vld [vmem:[%s3 + $0x3c8] sm:$0xff]
      %v1633 = vld [vmem:[%s3 + $0x3d0] sm:$0xff]
      %v1634 = vld [vmem:[%s3 + $0x3d8] sm:$0xff]
      %v1635 = vld [vmem:[%s3 + $0x3e0] sm:$0xff]
      %v1636 = vld [vmem:[%s3 + $0x3e8] sm:$0xff]
      %v1637 = vld [vmem:[%s3 + $0x3f0] sm:$0xff]
      %v1638 = vld [vmem:[%s3 + $0x3f8] sm:$0xff]
      %v1639 = vld [vmem:[%s3 + $0x400] sm:$0xff]
      %v1640 = vld [vmem:[%s3 + $0x408] sm:$0xff]
      %v1641 = vld [vmem:[%s3 + $0x410] sm:$0xff]
      %v1642 = vld [vmem:[%s3 + $0x418] sm:$0xff]
      %v1643 = vld [vmem:[%s3 + $0x420] sm:$0xff]
      %v1644 = vld [vmem:[%s3 + $0x428] sm:$0xff]
      %v1645 = vld [vmem:[%s3 + $0x430] sm:$0xff]
      %v1646 = vld [vmem:[%s3 + $0x438] sm:$0xff]
      %v1647 = vld [vmem:[%s3 + $0x440] sm:$0xff]
      %v1648 = vld [vmem:[%s3 + $0x448] sm:$0xff]
      %v1649 = vld [vmem:[%s3 + $0x450] sm:$0xff]
      %v1650 = vld [vmem:[%s3 + $0x458] sm:$0xff]
      %v1651 = vld [vmem:[%s3 + $0x460] sm:$0xff]
      %v1652 = vld [vmem:[%s3 + $0x468] sm:$0xff]
      %v1653 = vld [vmem:[%s3 + $0x470] sm:$0xff]
      %v1654 = vld [vmem:[%s3 + $0x478] sm:$0xff]
      %v1655 = vld [vmem:[%s3 + $0x480] sm:$0xff]
      %v1656 = vld [vmem:[%s3 + $0x488] sm:$0xff]
      %v1657 = vld [vmem:[%s3 + $0x490] sm:$0xff]
      %v1658 = vld [vmem:[%s3 + $0x498] sm:$0xff]
      %v1659 = vld [vmem:[%s3 + $0x4a0] sm:$0xff]
      %v1660 = vld [vmem:[%s3 + $0x4a8] sm:$0xff]
      %v1661 = vld [vmem:[%s3 + $0x4b0] sm:$0xff]
      %v1662 = vld [vmem:[%s3 + $0x4b8] sm:$0xff]
      %v1663 = vld [vmem:[%s3 + $0x4c0] sm:$0xff]
      %v1664 = vld [vmem:[%s3 + $0x4c8] sm:$0xff]
      %v1665 = vld [vmem:[%s3 + $0x4d0] sm:$0xff]
      %v1666 = vld [vmem:[%s3 + $0x4d8] sm:$0xff]
      %v1667 = vld [vmem:[%s3 + $0x4e0] sm:$0xff]
      %v1668 = vld [vmem:[%s3 + $0x4e8] sm:$0xff]
      %v1669 = vld [vmem:[%s3 + $0x4f0] sm:$0xff]
      %v1670 = vld [vmem:[%s3 + $0x4f8] sm:$0xff]
      %v1671 = vld [vmem:[%s3 + $0x500] sm:$0xff]
      %v1672 = vld [vmem:[%s3 + $0x508] sm:$0xff]
      %v1673 = vld [vmem:[%s3 + $0x510] sm:$0xff]
      %v1674 = vld [vmem:[%s3 + $0x518] sm:$0xff]
      %v1675 = vld [vmem:[%s3 + $0x520] sm:$0xff]
      %v1676 = vld [vmem:[%s3 + $0x528] sm:$0xff]
      %v1677 = vld [vmem:[%s3 + $0x530] sm:$0xff]
      %v1678 = vld [vmem:[%s3 + $0x538] sm:$0xff]
      %v1679 = vld [vmem:[%s3 + $0x540] sm:$0xff]
      %v1680 = vld [vmem:[%s3 + $0x548] sm:$0xff]
      %v1681 = vld [vmem:[%s3 + $0x550] sm:$0xff]
      %v1682 = vld [vmem:[%s3 + $0x558] sm:$0xff]
      %v1683 = vld [vmem:[%s3 + $0x560] sm:$0xff]
      %v1684 = vld [vmem:[%s3 + $0x568] sm:$0xff]
      %v1685 = vld [vmem:[%s3 + $0x570] sm:$0xff]
      %v1686 = vld [vmem:[%s3 + $0x578] sm:$0xff]
      %v1687 = vld [vmem:[%s3 + $0x580] sm:$0xff]
      %v1688 = vld [vmem:[%s3 + $0x588] sm:$0xff]
      %v1689 = vld [vmem:[%s3 + $0x590] sm:$0xff]
      %v1690 = vld [vmem:[%s3 + $0x598] sm:$0xff]
      %v1691 = vld [vmem:[%s3 + $0x5a0] sm:$0xff]
      %v1692 = vld [vmem:[%s3 + $0x5a8] sm:$0xff]
      %v1693 = vld [vmem:[%s3 + $0x5b0] sm:$0xff]
      %v1694 = vld [vmem:[%s3 + $0x5b8] sm:$0xff]
      %v1695 = vld [vmem:[%s3 + $0x5c0] sm:$0xff]
      %v1696 = vld [vmem:[%s3 + $0x5c8] sm:$0xff]
      %v1697 = vld [vmem:[%s3 + $0x5d0] sm:$0xff]
      %v1698 = vld [vmem:[%s3 + $0x5d8] sm:$0xff]
      %v1699 = vld [vmem:[%s3 + $0x5e0] sm:$0xff]
      %v1700 = vld [vmem:[%s3 + $0x5e8] sm:$0xff]
      %v1701 = vld [vmem:[%s3 + $0x5f0] sm:$0xff]
      %v1702 = vld [vmem:[%s3 + $0x5f8] sm:$0xff]
      %v1719 = vcombine.low %v1495, %v1496
      %v1720 = vcombine.low %v1497, %v1498
      %v1722 = vunpack.c.l.s4 1983009808
      %v1723 = vunpack.c.0.s8 %v1722
      %v1724 = vlaneseq
      %v1725 = vshrl.u32 %v1724, 7
      %v1726 = vsub.s32 %v1723, %v1725
      %v1727 = vrot.slane %v1719, %v1726
      %v1729 = vunpack.c.l.s4 1983009808
      %v1730 = vunpack.c.0.s8 %v1729
      %v1731 = vlaneseq
      %v1732 = vshrl.u32 %v1731, 7
      %v1733 = vsub.s32 %v1730, %v1732
      %v1734 = vrot.slane %v1720, %v1733
      %v1735 = vcombine.low %v1727, %v1734
      %v1736 = vcombine.high %v1727, %v1734
      %v1737 = vcombine.low %v1499, %v1500
      %v1738 = vcombine.low %v1501, %v1502
      %v1740 = vunpack.c.l.s4 1983009808
      %v1741 = vunpack.c.0.s8 %v1740
      %v1742 = vlaneseq
      %v1743 = vshrl.u32 %v1742, 7
      %v1744 = vsub.s32 %v1741, %v1743
      %v1745 = vrot.slane %v1737, %v1744
      %v1747 = vunpack.c.l.s4 1983009808
      %v1748 = vunpack.c.0.s8 %v1747
      %v1749 = vlaneseq
      %v1750 = vshrl.u32 %v1749, 7
      %v1751 = vsub.s32 %v1748, %v1750
      %v1752 = vrot.slane %v1738, %v1751
      %v1753 = vcombine.low %v1745, %v1752
      %v1754 = vcombine.high %v1745, %v1752
      %v1755 = vcombine.low %v1503, %v1504
      %v1756 = vcombine.low %v1505, %v1506
      %v1758 = vunpack.c.l.s4 1983009808
      %v1759 = vunpack.c.0.s8 %v1758
      %v1760 = vlaneseq
      %v1761 = vshrl.u32 %v1760, 7
      %v1762 = vsub.s32 %v1759, %v1761
      %v1763 = vrot.slane %v1755, %v1762
      %v1765 = vunpack.c.l.s4 1983009808
      %v1766 = vunpack.c.0.s8 %v1765
      %v1767 = vlaneseq
      %v1768 = vshrl.u32 %v1767, 7
      %v1769 = vsub.s32 %v1766, %v1768
      %v1770 = vrot.slane %v1756, %v1769
      %v1771 = vcombine.low %v1763, %v1770
      %v1772 = vcombine.high %v1763, %v1770
      %v1773 = vcombine.low %v1507, %v1508
      %v1774 = vcombine.low %v1509, %v1510
      %v1776 = vunpack.c.l.s4 1983009808
      %v1777 = vunpack.c.0.s8 %v1776
      %v1778 = vlaneseq
      %v1779 = vshrl.u32 %v1778, 7
      %v1780 = vsub.s32 %v1777, %v1779
      %v1781 = vrot.slane %v1773, %v1780
      %v1783 = vunpack.c.l.s4 1983009808
      %v1784 = vunpack.c.0.s8 %v1783
      %v1785 = vlaneseq
      %v1786 = vshrl.u32 %v1785, 7
      %v1787 = vsub.s32 %v1784, %v1786
      %v1788 = vrot.slane %v1774, %v1787
      %v1789 = vcombine.low %v1781, %v1788
      %v1790 = vcombine.high %v1781, %v1788
      %1799 = vmatprep.subr.mxu0 %v1512
      %1800 = vmatpush1.msra.mxu0 %v1511
      %1801 = vmatprep.subr.mxu0 %v1518
      %1802 = vmatpush1.msra.mxu0 %v1517
      %1803 = vmatprep.subr.mxu0 %v1524
      %1804 = vmatpush1.msra.mxu0 %v1523
      %1805 = vmatprep.subr.mxu0 %v1530
      %1806 = vmatpush1.msra.mxu0 %v1529
      %1807 = vmatprep.subr.mxu0 %v1536
      %1808 = vmatpush1.msra.mxu0 %v1535
      %1809 = vmatprep.subr.mxu0 %v1542
      %1810 = vmatpush1.msra.mxu0 %v1541
      %1811 = vmatprep.subr.mxu0 %v1548
      %1812 = vmatpush1.msra.mxu0 %v1547
      %1813 = vmatprep.subr.mxu0 %v1554
      %1814 = vmatpush1.msra.mxu0 %v1553
      %1815 = vmatprep.subr.mxu0 %v1560
      %1816 = vmatpush1.msra.mxu0 %v1559
      %1817 = vmatprep.subr.mxu0 %v1566
      %1818 = vmatpush1.msra.mxu0 %v1565
      %1819 = vmatprep.subr.mxu0 %v1572
      %1820 = vmatpush1.msra.mxu0 %v1571
      %1821 = vmatprep.subr.mxu0 %v1578
      %1822 = vmatpush1.msra.mxu0 %v1577
      %1823 = vmatprep.subr.mxu0 %v1584
      %1824 = vmatpush1.msra.mxu0 %v1583
      %1825 = vmatprep.subr.mxu0 %v1590
      %1826 = vmatpush1.msra.mxu0 %v1589
      %1827 = vmatprep.subr.mxu0 %v1596
      %1828 = vmatpush1.msra.mxu0 %v1595
      %1829 = vmatprep.subr.mxu0 %v1602
      %1830 = vmatpush1.msra.mxu0 %v1601
      %1831 = vmatprep.subr.mxu0 %v1608
      %1832 = vmatpush1.msra.mxu0 %v1607
      %1833 = vmatprep.subr.mxu0 %v1614
      %1834 = vmatpush1.msra.mxu0 %v1613
      %1835 = vmatprep.subr.mxu0 %v1620
      %1836 = vmatpush1.msra.mxu0 %v1619
      %1837 = vmatprep.subr.mxu0 %v1626
      %1838 = vmatpush1.msra.mxu0 %v1625
      %1839 = vmatprep.subr.mxu0 %v1632
      %1840 = vmatpush1.msra.mxu0 %v1631
      %1841 = vmatprep.subr.mxu0 %v1638
      %1842 = vmatpush1.msra.mxu0 %v1637
      %1843 = vmatprep.subr.mxu0 %v1644
      %1844 = vmatpush1.msra.mxu0 %v1643
      %1845 = vmatprep.subr.mxu0 %v1650
      %1846 = vmatpush1.msra.mxu0 %v1649
      %1847 = vmatprep.subr.mxu0 %v1656
      %1848 = vmatpush1.msra.mxu0 %v1655
      %1849 = vmatprep.subr.mxu0 %v1662
      %1850 = vmatpush1.msra.mxu0 %v1661
      %1851 = vmatprep.subr.mxu0 %v1668
      %1852 = vmatpush1.msra.mxu0 %v1667
      %1853 = vmatprep.subr.mxu0 %v1674
      %1854 = vmatpush1.msra.mxu0 %v1673
      %1855 = vmatprep.subr.mxu0 %v1680
      %1856 = vmatpush1.msra.mxu0 %v1679
      %1857 = vmatprep.subr.mxu0 %v1686
      %1858 = vmatpush1.msra.mxu0 %v1685
      %1859 = vmatprep.subr.mxu0 %v1692
      %1860 = vmatpush1.msra.mxu0 %v1691
      %1861 = vmatprep.subr.mxu0 %v1698
      %1862 = vmatpush1.msra.mxu0 %v1697
      %1863 = vmatprep.mubr.f32.mxu0 %v1736
      %1864 = vmatmul.mubr.f32.gmra.mrb[0].mxu0 %v1735
      %v1865 = vpop.f32.mrb[0].mxu0
      %v1866 = vadd.f32 0.0, %v1865
      %v1867 = vpop.f32.mrb[0].mxu0
      %v1868 = vadd.f32 0.0, %v1867
      %1869 = vmatprep.mubr.f32.mxu0 %v1754
      %1870 = vmatmul.mubr.f32.gmra.mrb[0].mxu0 %v1753
      %v1871 = vpop.f32.mrb[0].mxu0
      %v1872 = vadd.f32 0.0, %v1871
      %v1873 = vpop.f32.mrb[0].mxu0
      %v1874 = vadd.f32 0.0, %v1873
      %1875 = vmatprep.mubr.f32.mxu0 %v1772
      %1876 = vmatmul.mubr.f32.gmra.mrb[0].mxu0 %v1771
      %v1877 = vpop.f32.mrb[0].mxu0
      %v1878 = vadd.f32 0.0, %v1877
      %v1879 = vpop.f32.mrb[0].mxu0
      %v1880 = vadd.f32 0.0, %v1879
      %1881 = vmatprep.mubr.f32.mxu0 %v1790
      %1882 = vmatmul.mubr.f32.gmra.mrb[0].mxu0 %v1789
      %v1883 = vpop.f32.mrb[0].mxu0
      %v1884 = vadd.f32 0.0, %v1883
      %v1885 = vpop.f32.mrb[0].mxu0
      %v1886 = vadd.f32 0.0, %v1885
      %1887 = vdwg.mxu0
      %1888 = vmatprep.subr.mxu0 %v1514
      %1889 = vmatpush1.msra.mxu0 %v1513
      %1890 = vmatprep.subr.mxu0 %v1520
      %1891 = vmatpush1.msra.mxu0 %v1519
      %1892 = vmatprep.subr.mxu0 %v1526
      %1893 = vmatpush1.msra.mxu0 %v1525
      %1894 = vmatprep.subr.mxu0 %v1532
      %1895 = vmatpush1.msra.mxu0 %v1531
      %1896 = vmatprep.subr.mxu0 %v1538
      %1897 = vmatpush1.msra.mxu0 %v1537
      %1898 = vmatprep.subr.mxu0 %v1544
      %1899 = vmatpush1.msra.mxu0 %v1543
      %1900 = vmatprep.subr.mxu0 %v1550
      %1901 = vmatpush1.msra.mxu0 %v1549
      %1902 = vmatprep.subr.mxu0 %v1556
      %1903 = vmatpush1.msra.mxu0 %v1555
      %1904 = vmatprep.subr.mxu0 %v1562
      %1905 = vmatpush1.msra.mxu0 %v1561
      %1906 = vmatprep.subr.mxu0 %v1568
      %1907 = vmatpush1.msra.mxu0 %v1567
      %1908 = vmatprep.subr.mxu0 %v1574
      %1909 = vmatpush1.msra.mxu0 %v1573
      %1910 = vmatprep.subr.mxu0 %v1580
      %1911 = vmatpush1.msra.mxu0 %v1579
      %1912 = vmatprep.subr.mxu0 %v1586
      %1913 = vmatpush1.msra.mxu0 %v1585
      %1914 = vmatprep.subr.mxu0 %v1592
      %1915 = vmatpush1.msra.mxu0 %v1591
      %1916 = vmatprep.subr.mxu0 %v1598
      %1917 = vmatpush1.msra.mxu0 %v1597
      %1918 = vmatprep.subr.mxu0 %v1604
      %1919 = vmatpush1.msra.mxu0 %v1603
      %1920 = vmatprep.subr.mxu0 %v1610
      %1921 = vmatpush1.msra.mxu0 %v1609
      %1922 = vmatprep.subr.mxu0 %v1616
      %1923 = vmatpush1.msra.mxu0 %v1615
      %1924 = vmatprep.subr.mxu0 %v1622
      %1925 = vmatpush1.msra.mxu0 %v1621
      %1926 = vmatprep.subr.mxu0 %v1628
      %1927 = vmatpush1.msra.mxu0 %v1627
      %1928 = vmatprep.subr.mxu0 %v1634
      %1929 = vmatpush1.msra.mxu0 %v1633
      %1930 = vmatprep.subr.mxu0 %v1640
      %1931 = vmatpush1.msra.mxu0 %v1639
      %1932 = vmatprep.subr.mxu0 %v1646
      %1933 = vmatpush1.msra.mxu0 %v1645
      %1934 = vmatprep.subr.mxu0 %v1652
      %1935 = vmatpush1.msra.mxu0 %v1651
      %1936 = vmatprep.subr.mxu0 %v1658
      %1937 = vmatpush1.msra.mxu0 %v1657
      %1938 = vmatprep.subr.mxu0 %v1664
      %1939 = vmatpush1.msra.mxu0 %v1663
      %1940 = vmatprep.subr.mxu0 %v1670
      %1941 = vmatpush1.msra.mxu0 %v1669
      %1942 = vmatprep.subr.mxu0 %v1676
      %1943 = vmatpush1.msra.mxu0 %v1675
      %1944 = vmatprep.subr.mxu0 %v1682
      %1945 = vmatpush1.msra.mxu0 %v1681
      %1946 = vmatprep.subr.mxu0 %v1688
      %1947 = vmatpush1.msra.mxu0 %v1687
      %1948 = vmatprep.subr.mxu0 %v1694
      %1949 = vmatpush1.msra.mxu0 %v1693
      %1950 = vmatprep.subr.mxu0 %v1700
      %1951 = vmatpush1.msra.mxu0 %v1699
      %1952 = vmatprep.mubr.f32.mxu0 %v1736
      %1953 = vmatmul.mubr.f32.gmra.mrb[0].mxu0 %v1735
      %v1954 = vpop.f32.mrb[0].mxu0
      %v1955 = vadd.f32 0.0, %v1954
      %v1956 = vpop.f32.mrb[0].mxu0
      %v1957 = vadd.f32 0.0, %v1956
      %1958 = vmatprep.mubr.f32.mxu0 %v1754
      %1959 = vmatmul.mubr.f32.gmra.mrb[0].mxu0 %v1753
      %v1960 = vpop.f32.mrb[0].mxu0
      %v1961 = vadd.f32 0.0, %v1960
      %v1962 = vpop.f32.mrb[0].mxu0
      %v1963 = vadd.f32 0.0, %v1962
      %1964 = vmatprep.mubr.f32.mxu0 %v1772
      %1965 = vmatmul.mubr.f32.gmra.mrb[0].mxu0 %v1771
      %v1966 = vpop.f32.mrb[0].mxu0
      %v1967 = vadd.f32 0.0, %v1966
      %v1968 = vpop.f32.mrb[0].mxu0
      %v1969 = vadd.f32 0.0, %v1968
      %1970 = vmatprep.mubr.f32.mxu0 %v1790
      %1971 = vmatmul.mubr.f32.gmra.mrb[0].mxu0 %v1789
      %v1972 = vpop.f32.mrb[0].mxu0
      %v1973 = vadd.f32 0.0, %v1972
      %v1974 = vpop.f32.mrb[0].mxu0
      %v1975 = vadd.f32 0.0, %v1974
      %1976 = vdwg.mxu0
      %1977 = vmatprep.subr.mxu0 %v1516
      %1978 = vmatpush1.msra.mxu0 %v1515
      %1979 = vmatprep.subr.mxu0 %v1522
      %1980 = vmatpush1.msra.mxu0 %v1521
      %1981 = vmatprep.subr.mxu0 %v1528
      %1982 = vmatpush1.msra.mxu0 %v1527
      %1983 = vmatprep.subr.mxu0 %v1534
      %1984 = vmatpush1.msra.mxu0 %v1533
      %1985 = vmatprep.subr.mxu0 %v1540
      %1986 = vmatpush1.msra.mxu0 %v1539
      %1987 = vmatprep.subr.mxu0 %v1546
      %1988 = vmatpush1.msra.mxu0 %v1545
      %1989 = vmatprep.subr.mxu0 %v1552
      %1990 = vmatpush1.msra.mxu0 %v1551
      %1991 = vmatprep.subr.mxu0 %v1558
      %1992 = vmatpush1.msra.mxu0 %v1557
      %1993 = vmatprep.subr.mxu0 %v1564
      %1994 = vmatpush1.msra.mxu0 %v1563
      %1995 = vmatprep.subr.mxu0 %v1570
      %1996 = vmatpush1.msra.mxu0 %v1569
      %1997 = vmatprep.subr.mxu0 %v1576
      %1998 = vmatpush1.msra.mxu0 %v1575
      %1999 = vmatprep.subr.mxu0 %v1582
      %2000 = vmatpush1.msra.mxu0 %v1581
      %2001 = vmatprep.subr.mxu0 %v1588
      %2002 = vmatpush1.msra.mxu0 %v1587
      %2003 = vmatprep.subr.mxu0 %v1594
      %2004 = vmatpush1.msra.mxu0 %v1593
      %2005 = vmatprep.subr.mxu0 %v1600
      %2006 = vmatpush1.msra.mxu0 %v1599
      %2007 = vmatprep.subr.mxu0 %v1606
      %2008 = vmatpush1.msra.mxu0 %v1605
      %2009 = vmatprep.subr.mxu0 %v1612
      %2010 = vmatpush1.msra.mxu0 %v1611
      %2011 = vmatprep.subr.mxu0 %v1618
      %2012 = vmatpush1.msra.mxu0 %v1617
      %2013 = vmatprep.subr.mxu0 %v1624
      %2014 = vmatpush1.msra.mxu0 %v1623
      %2015 = vmatprep.subr.mxu0 %v1630
      %2016 = vmatpush1.msra.mxu0 %v1629
      %2017 = vmatprep.subr.mxu0 %v1636
      %2018 = vmatpush1.msra.mxu0 %v1635
      %2019 = vmatprep.subr.mxu0 %v1642
      %2020 = vmatpush1.msra.mxu0 %v1641
      %2021 = vmatprep.subr.mxu0 %v1648
      %2022 = vmatpush1.msra.mxu0 %v1647
      %2023 = vmatprep.subr.mxu0 %v1654
      %2024 = vmatpush1.msra.mxu0 %v1653
      %2025 = vmatprep.subr.mxu0 %v1660
      %2026 = vmatpush1.msra.mxu0 %v1659
      %2027 = vmatprep.subr.mxu0 %v1666
      %2028 = vmatpush1.msra.mxu0 %v1665
      %2029 = vmatprep.subr.mxu0 %v1672
      %2030 = vmatpush1.msra.mxu0 %v1671
      %2031 = vmatprep.subr.mxu0 %v1678
      %2032 = vmatpush1.msra.mxu0 %v1677
      %2033 = vmatprep.subr.mxu0 %v1684
      %2034 = vmatpush1.msra.mxu0 %v1683
      %2035 = vmatprep.subr.mxu0 %v1690
      %2036 = vmatpush1.msra.mxu0 %v1689
      %2037 = vmatprep.subr.mxu0 %v1696
      %2038 = vmatpush1.msra.mxu0 %v1695
      %2039 = vmatprep.subr.mxu0 %v1702
      %2040 = vmatpush1.msra.mxu0 %v1701
      %2041 = vmatprep.mubr.f32.mxu0 %v1736
      %2042 = vmatmul.mubr.f32.gmra.mrb[0].mxu0 %v1735
      %v2043 = vpop.f32.mrb[0].mxu0
      %v2044 = vadd.f32 0.0, %v2043
      %v2045 = vpop.f32.mrb[0].mxu0
      %v2046 = vadd.f32 0.0, %v2045
      %2047 = vmatprep.mubr.f32.mxu0 %v1754
      %2048 = vmatmul.mubr.f32.gmra.mrb[0].mxu0 %v1753
      %v2049 = vpop.f32.mrb[0].mxu0
      %v2050 = vadd.f32 0.0, %v2049
      %v2051 = vpop.f32.mrb[0].mxu0
      %v2052 = vadd.f32 0.0, %v2051
      %2053 = vmatprep.mubr.f32.mxu0 %v1772
      %2054 = vmatmul.mubr.f32.gmra.mrb[0].mxu0 %v1771
      %v2055 = vpop.f32.mrb[0].mxu0
      %v2056 = vadd.f32 0.0, %v2055
      %v2057 = vpop.f32.mrb[0].mxu0
      %v2058 = vadd.f32 0.0, %v2057
      %2059 = vmatprep.mubr.f32.mxu0 %v1790
      %2060 = vmatmul.mubr.f32.gmra.mrb[0].mxu0 %v1789
      %v2061 = vpop.f32.mrb[0].mxu0
      %v2062 = vadd.f32 0.0, %v2061
      %v2063 = vpop.f32.mrb[0].mxu0
      %v2064 = vadd.f32 0.0, %v2063
      %2065 = vdwg.mxu0
      %v2066 = vlaneseq
      %v2067 = vshrl.u32 %v2066, 7
      %v2068 = vadd.s32 %v2067, 8
      %v2069 = vadd.s32 %v2067, 16
      %v2070 = vadd.s32 %v2067, 24
      %v2071 = vlaneseq
      %v2072 = vand.u32 %v2071, 127
      %v2073 = vsub.s32 %v2067, 1
      %v2074 = vsub.s32 %v2068, 1
      %v2075 = vsub.s32 %v2069, 1
      %v2076 = vsub.s32 %v2070, 1
      %vm2077 = vcmp.eq.s32.totalorder %v2072, %v2073
      %vm2078 = vcmp.eq.s32.totalorder %v2072, %v2074
      %vm2079 = vcmp.eq.s32.totalorder %v2072, %v2075
      %vm2080 = vcmp.eq.s32.totalorder %v2072, %v2076
      %v2081 = vsel %vm2077, 1, 0
      %v2082 = vsel %vm2078, 1, 0
      %v2083 = vsel %vm2079, 1, 0
      %v2084 = vsel %vm2080, 1, 0
      %v2085 = vcvt.s32.f32 %v2081
      %v2086 = vcvt.s32.f32 %v2082
      %v2087 = vcvt.s32.f32 %v2083
      %v2088 = vcvt.s32.f32 %v2084
      %v2089 = vadd.s32 %v2067, 1
      %v2090 = vadd.s32 %v2068, 1
      %v2091 = vadd.s32 %v2069, 1
      %v2092 = vadd.s32 %v2070, 1
      %vm2093 = vcmp.eq.s32.totalorder %v2072, %v2089
      %vm2094 = vcmp.eq.s32.totalorder %v2072, %v2090
      %vm2095 = vcmp.eq.s32.totalorder %v2072, %v2091
      %vm2096 = vcmp.eq.s32.totalorder %v2072, %v2092
      %v2097 = vsel %vm2093, 1, 0
      %v2098 = vsel %vm2094, 1, 0
      %v2099 = vsel %vm2095, 1, 0
      %v2100 = vsel %vm2096, 1, 0
      %v2101 = vcvt.s32.f32 %v2097
      %v2102 = vcvt.s32.f32 %v2098
      %v2103 = vcvt.s32.f32 %v2099
      %v2104 = vcvt.s32.f32 %v2100
      %vm2105 = vcmask 261120
      %v2107 = vsel %vm2105, %v2085, 0
      %v2110 = vsel %vm2105, %v2086, 0
      %v2113 = vsel %vm2105, %v2087, 0
      %v2116 = vsel %vm2105, %v2088, 0
      %2118 = vmatprep.subr.mxu0 %v1868
      %2119 = vmatpush1.msra.mxu0 %v1866
      %2120 = vmatprep.subr.mxu0 %v1874
      %2121 = vmatpush1.msra.mxu0 %v1872
      %2122 = vmatprep.subr.mxu0 %v1880
      %2123 = vmatpush1.msra.mxu0 %v1878
      %2124 = vmatprep.subr.mxu0 %v1886
      %2125 = vmatpush1.msra.mxu0 %v1884
      %2126 = vmatprep.subr.mxu0 0.0
      %2127 = vmatpush1.msra.mxu0 0.0
      %2128 = vmatprep.subr.mxu0 0.0
      %2129 = vmatpush1.msra.mxu0 0.0
      %2130 = vmatprep.subr.mxu0 0.0
      %2131 = vmatpush1.msra.mxu0 0.0
      %2132 = vmatprep.subr.mxu0 0.0
      %2133 = vmatpush1.msra.mxu0 0.0
      %2134 = vmatprep.subr.mxu0 0.0
      %2135 = vmatpush1.msra.mxu0 0.0
      %2136 = vmatprep.subr.mxu0 0.0
      %2137 = vmatpush1.msra.mxu0 0.0
      %2138 = vmatprep.subr.mxu0 0.0
      %2139 = vmatpush1.msra.mxu0 0.0
      %2140 = vmatprep.subr.mxu0 0.0
      %2141 = vmatpush1.msra.mxu0 0.0
      %2142 = vmatprep.subr.mxu0 0.0
      %2143 = vmatpush1.msra.mxu0 0.0
      %2144 = vmatprep.subr.mxu0 0.0
      %2145 = vmatpush1.msra.mxu0 0.0
      %2146 = vmatprep.subr.mxu0 0.0
      %2147 = vmatpush1.msra.mxu0 0.0
      %2148 = vmatprep.subr.mxu0 0.0
      %2149 = vmatpush1.msra.mxu0 0.0
      %2150 = vmatprep.subr.mxu0 0.0
      %2151 = vmatpush1.msra.mxu0 0.0
      %2152 = vmatprep.subr.mxu0 0.0
      %2153 = vmatpush1.msra.mxu0 0.0
      %2154 = vmatprep.subr.mxu0 0.0
      %2155 = vmatpush1.msra.mxu0 0.0
      %2156 = vmatprep.subr.mxu0 0.0
      %2157 = vmatpush1.msra.mxu0 0.0
      %2158 = vmatprep.subr.mxu0 0.0
      %2159 = vmatpush1.msra.mxu0 0.0
      %2160 = vmatprep.subr.mxu0 0.0
      %2161 = vmatpush1.msra.mxu0 0.0
      %2162 = vmatprep.subr.mxu0 0.0
      %2163 = vmatpush1.msra.mxu0 0.0
      %2164 = vmatprep.subr.mxu0 0.0
      %2165 = vmatpush1.msra.mxu0 0.0
      %2166 = vmatprep.subr.mxu0 0.0
      %2167 = vmatpush1.msra.mxu0 0.0
      %2168 = vmatprep.subr.mxu0 0.0
      %2169 = vmatpush1.msra.mxu0 0.0
      %2170 = vmatprep.subr.mxu0 0.0
      %2171 = vmatpush1.msra.mxu0 0.0
      %2172 = vmatprep.subr.mxu0 0.0
      %2173 = vmatpush1.msra.mxu0 0.0
      %2174 = vmatprep.subr.mxu0 0.0
      %2175 = vmatpush1.msra.mxu0 0.0
      %2176 = vmatprep.subr.mxu0 0.0
      %2177 = vmatpush1.msra.mxu0 0.0
      %2178 = vmatprep.subr.mxu0 0.0
      %2179 = vmatpush1.msra.mxu0 0.0
      %2180 = vmatprep.subr.mxu0 0.0
      %2181 = vmatpush1.msra.mxu0 0.0
      %2182 = vmatprep.mubr.f32.mxu0 0.0
      %2183 = vmatmul.mubr.f32.gmra.mrb[0].mxu0 %v2107
      %v2184 = vpop.f32.mrb[0].mxu0
      %v2185 = vadd.f32 0.0, %v2184
      %v2186 = vpop.f32.mrb[0].mxu0
      %v2187 = vadd.f32 0.0, %v2186
      %2188 = vmatprep.mubr.f32.mxu0 0.0
      %2189 = vmatmul.mubr.f32.gmra.mrb[0].mxu0 %v2110
      %v2190 = vpop.f32.mrb[0].mxu0
      %v2191 = vadd.f32 0.0, %v2190
      %v2192 = vpop.f32.mrb[0].mxu0
      %v2193 = vadd.f32 0.0, %v2192
      %2194 = vmatprep.mubr.f32.mxu0 0.0
      %2195 = vmatmul.mubr.f32.gmra.mrb[0].mxu0 %v2113
      %v2196 = vpop.f32.mrb[0].mxu0
      %v2197 = vadd.f32 0.0, %v2196
      %v2198 = vpop.f32.mrb[0].mxu0
      %v2199 = vadd.f32 0.0, %v2198
      %2200 = vmatprep.mubr.f32.mxu0 0.0
      %2201 = vmatmul.mubr.f32.gmra.mrb[0].mxu0 %v2116
      %v2202 = vpop.f32.mrb[0].mxu0
      %v2203 = vadd.f32 0.0, %v2202
      %v2204 = vpop.f32.mrb[0].mxu0
      %v2205 = vadd.f32 0.0, %v2204
      %2206 = vdwg.mxu0
      %v2207 = vadd.f32 %v1955, %v2185
      %v2208 = vadd.f32 %v1957, %v2187
      %v2209 = vadd.f32 %v1961, %v2191
      %v2210 = vadd.f32 %v1963, %v2193
      %v2211 = vadd.f32 %v1967, %v2197
      %v2212 = vadd.f32 %v1969, %v2199
      %v2213 = vadd.f32 %v1973, %v2203
      %v2214 = vadd.f32 %v1975, %v2205
      %v2216 = vsel %vm2105, %v2101, 0
      %v2219 = vsel %vm2105, %v2102, 0
      %v2222 = vsel %vm2105, %v2103, 0
      %v2225 = vsel %vm2105, %v2104, 0
      %2227 = vmatprep.subr.mxu0 %v2046
      %2228 = vmatpush1.msra.mxu0 %v2044
      %2229 = vmatprep.subr.mxu0 %v2052
      %2230 = vmatpush1.msra.mxu0 %v2050
      %2231 = vmatprep.subr.mxu0 %v2058
      %2232 = vmatpush1.msra.mxu0 %v2056
      %2233 = vmatprep.subr.mxu0 %v2064
      %2234 = vmatpush1.msra.mxu0 %v2062
      %2235 = vmatprep.subr.mxu0 0.0
      %2236 = vmatpush1.msra.mxu0 0.0
      %2237 = vmatprep.subr.mxu0 0.0
      %2238 = vmatpush1.msra.mxu0 0.0
      %2239 = vmatprep.subr.mxu0 0.0
      %2240 = vmatpush1.msra.mxu0 0.0
      %2241 = vmatprep.subr.mxu0 0.0
      %2242 = vmatpush1.msra.mxu0 0.0
      %2243 = vmatprep.subr.mxu0 0.0
      %2244 = vmatpush1.msra.mxu0 0.0
      %2245 = vmatprep.subr.mxu0 0.0
      %2246 = vmatpush1.msra.mxu0 0.0
      %2247 = vmatprep.subr.mxu0 0.0
      %2248 = vmatpush1.msra.mxu0 0.0
      %2249 = vmatprep.subr.mxu0 0.0
      %2250 = vmatpush1.msra.mxu0 0.0
      %2251 = vmatprep.subr.mxu0 0.0
      %2252 = vmatpush1.msra.mxu0 0.0
      %2253 = vmatprep.subr.mxu0 0.0
      %2254 = vmatpush1.msra.mxu0 0.0
      %2255 = vmatprep.subr.mxu0 0.0
      %2256 = vmatpush1.msra.mxu0 0.0
      %2257 = vmatprep.subr.mxu0 0.0
      %2258 = vmatpush1.msra.mxu0 0.0
      %2259 = vmatprep.subr.mxu0 0.0
      %2260 = vmatpush1.msra.mxu0 0.0
      %2261 = vmatprep.subr.mxu0 0.0
      %2262 = vmatpush1.msra.mxu0 0.0
      %2263 = vmatprep.subr.mxu0 0.0
      %2264 = vmatpush1.msra.mxu0 0.0
      %2265 = vmatprep.subr.mxu0 0.0
      %2266 = vmatpush1.msra.mxu0 0.0
      %2267 = vmatprep.subr.mxu0 0.0
      %2268 = vmatpush1.msra.mxu0 0.0
      %2269 = vmatprep.subr.mxu0 0.0
      %2270 = vmatpush1.msra.mxu0 0.0
      %2271 = vmatprep.subr.mxu0 0.0
      %2272 = vmatpush1.msra.mxu0 0.0
      %2273 = vmatprep.subr.mxu0 0.0
      %2274 = vmatpush1.msra.mxu0 0.0
      %2275 = vmatprep.subr.mxu0 0.0
      %2276 = vmatpush1.msra.mxu0 0.0
      %2277 = vmatprep.subr.mxu0 0.0
      %2278 = vmatpush1.msra.mxu0 0.0
      %2279 = vmatprep.subr.mxu0 0.0
      %2280 = vmatpush1.msra.mxu0 0.0
      %2281 = vmatprep.subr.mxu0 0.0
      %2282 = vmatpush1.msra.mxu0 0.0
      %2283 = vmatprep.subr.mxu0 0.0
      %2284 = vmatpush1.msra.mxu0 0.0
      %2285 = vmatprep.subr.mxu0 0.0
      %2286 = vmatpush1.msra.mxu0 0.0
      %2287 = vmatprep.subr.mxu0 0.0
      %2288 = vmatpush1.msra.mxu0 0.0
      %2289 = vmatprep.subr.mxu0 0.0
      %2290 = vmatpush1.msra.mxu0 0.0
      %2291 = vmatprep.mubr.f32.mxu0 0.0
      %2292 = vmatmul.mubr.f32.gmra.mrb[0].mxu0 %v2216
      %v2293 = vpop.f32.mrb[0].mxu0
      %v2294 = vadd.f32 0.0, %v2293
      %v2295 = vpop.f32.mrb[0].mxu0
      %v2296 = vadd.f32 0.0, %v2295
      %2297 = vmatprep.mubr.f32.mxu0 0.0
      %2298 = vmatmul.mubr.f32.gmra.mrb[0].mxu0 %v2219
      %v2299 = vpop.f32.mrb[0].mxu0
      %v2300 = vadd.f32 0.0, %v2299
      %v2301 = vpop.f32.mrb[0].mxu0
      %v2302 = vadd.f32 0.0, %v2301
      %2303 = vmatprep.mubr.f32.mxu0 0.0
      %2304 = vmatmul.mubr.f32.gmra.mrb[0].mxu0 %v2222
      %v2305 = vpop.f32.mrb[0].mxu0
      %v2306 = vadd.f32 0.0, %v2305
      %v2307 = vpop.f32.mrb[0].mxu0
      %v2308 = vadd.f32 0.0, %v2307
      %2309 = vmatprep.mubr.f32.mxu0 0.0
      %2310 = vmatmul.mubr.f32.gmra.mrb[0].mxu0 %v2225
      %v2311 = vpop.f32.mrb[0].mxu0
      %v2312 = vadd.f32 0.0, %v2311
      %v2313 = vpop.f32.mrb[0].mxu0
      %v2314 = vadd.f32 0.0, %v2313
      %2315 = vdwg.mxu0
      %v2316 = vadd.f32 %v2207, %v2294
      %v2317 = vadd.f32 %v2208, %v2296
      %v2318 = vadd.f32 %v2209, %v2300
      %v2319 = vadd.f32 %v2210, %v2302
      %v2320 = vadd.f32 %v2211, %v2306
      %v2321 = vadd.f32 %v2212, %v2308
      %v2322 = vadd.f32 %v2213, %v2312
      %v2323 = vadd.f32 %v2214, %v2314
      %v2324 = vld [vmem:[%s5] sm:$0x3]
      %v2326 = vlaneseq
      %v2327 = vshrl.u32 %v2326, 7
      %v2328 = vsub.s32 0, %v2327
      %v2329 = vrot.slane %v2324, %v2328
      %v2330 = vlaneseq
      %v2331 = vshrl.u32 %v2330, 7
      %v2332 = vsub.s32 1, %v2331
      %v2333 = vrot.slane %v2324, %v2332
      %v2336 = vadd.f32 %v2316, %v2329
      %v2337 = vadd.f32 %v2317, %v2333
      %v2338 = vadd.f32 %v2318, %v2329
      %v2339 = vadd.f32 %v2319, %v2333
      %v2340 = vadd.f32 %v2320, %v2329
      %v2341 = vadd.f32 %v2321, %v2333
      %v2342 = vadd.f32 %v2322, %v2329
      %v2343 = vadd.f32 %v2323, %v2333
      %vm2344 = vcmp.ge.f32.partialorder %v2336, 0.0
      %vm2345 = vcmp.ge.f32.partialorder %v2337, 0.0
      %vm2346 = vcmp.ge.f32.partialorder %v2338, 0.0
      %vm2347 = vcmp.ge.f32.partialorder %v2339, 0.0
      %vm2348 = vcmp.ge.f32.partialorder %v2340, 0.0
      %vm2349 = vcmp.ge.f32.partialorder %v2341, 0.0
      %vm2350 = vcmp.ge.f32.partialorder %v2342, 0.0
      %vm2351 = vcmp.ge.f32.partialorder %v2343, 0.0
      %v2352 = vmul.f32 %v2336, 0.01
      %v2353 = vmul.f32 %v2337, 0.01
      %v2354 = vmul.f32 %v2338, 0.01
      %v2355 = vmul.f32 %v2339, 0.01
      %v2356 = vmul.f32 %v2340, 0.01
      %v2357 = vmul.f32 %v2341, 0.01
      %v2358 = vmul.f32 %v2342, 0.01
      %v2359 = vmul.f32 %v2343, 0.01
      %v2360 = vsel %vm2344, %v2336, %v2352
      %v2361 = vsel %vm2345, %v2337, %v2353
      %v2362 = vsel %vm2346, %v2338, %v2354
      %v2363 = vsel %vm2347, %v2339, %v2355
      %v2364 = vsel %vm2348, %v2340, %v2356
      %v2365 = vsel %vm2349, %v2341, %v2357
      %v2366 = vsel %vm2350, %v2342, %v2358
      %v2367 = vsel %vm2351, %v2343, %v2359
      %2368 = vst [vmem:[%s271] sm:$0xff] %v2360
      %2369 = vst [vmem:[%s271 + $0x8] sm:$0xff] %v2361
      %2370 = vst [vmem:[%s271 + $0x10] sm:$0xff] %v2362
      %2371 = vst [vmem:[%s271 + $0x18] sm:$0xff] %v2363
      %2372 = vst [vmem:[%s271 + $0x20] sm:$0xff] %v2364
      %2373 = vst [vmem:[%s271 + $0x28] sm:$0xff] %v2365
      %2374 = vst [vmem:[%s271 + $0x30] sm:$0xff] %v2366
      %2375 = vst [vmem:[%s271 + $0x38] sm:$0xff] %v2367
      %p2376 = scmp.lt.s32.totalorder %s17, 1
      %s2377 = scalar_select %p2376, %s17, 1
      %s2378 = smul.addr %s2377, 8
      %s2379 = smul.addr %s2378, 8
      %s2380 = scalar_lea.vmem %s6, %s2379
      // Predicated region
      $region45: #{convup_forward.1} parent=43 // pred_check
        %p2381 = pneg %p171
      $region46: #{convup_forward.1} parent=43 // pred_check_branch
        %2383 = sbr.rel (%p2381) target = $region48
      $region47: #{convup_forward.1} parent=43 // pred_region
        _
      $region48: #{convup_forward.1} parent=43 // pred_fallthru
        _
    $region44: #{convup_forward.1} parent=5 // pred_fallthru
      _
    %p2384 = scmp.le.s32.totalorder 2, %s12
    // Predicated region
    $region49: #{convup_forward.1} parent=5 // pred_check
      %p2385 = pneg %p2384
    $region50: #{convup_forward.1} parent=5 // pred_check_branch
      %2387 = sbr.rel (%p2385) target = $region52
    $region51: #{convup_forward.1} parent=5 // pred_region
      %s2388 = ssub.s32 %s12, 2
      // Predicated region
      $region53: #{convup_forward.1} parent=51 // pred_check
        %p2389 = pneg %p177
      $region54: #{convup_forward.1} parent=51 // pred_check_branch
        %2391 = sbr.rel (%p2389) target = $region56
      $region55: #{convup_forward.1} parent=51 // pred_region
        %p2392 = scmp.lt.s32.totalorder %s18, 1
        %s2393 = scalar_select %p2392, %s18, 1
        %s2394 = smul.addr %s2393, 8
        %s2395 = smul.addr %s2394, 8
        %s2396 = scalar_lea.vmem %s6, %s2395
      $region56: #{convup_forward.1} parent=51 // pred_fallthru
        _
    $region52: #{convup_forward.1} parent=5 // pred_fallthru
      _
  $region6: #{convup_forward.1} parent=0 // loop_footer
    %s16 = sadd.s32 1, %s12
  $region7: #{convup_forward.1} parent=0 // loop_footer_branch
    %11 = sbr.rel target = $region3
  $region8: #{convup_forward.1} parent=0 // loop_exit
    _

</llo_original>
